<compile_context>
chip_gen: v7x
topology: tpu7x:2x2x1
jax: 0.10.0
libtpu: 0.0.40
codegen_flags: <defaults>
</compile_context>

<pallas_src>
import functools

import jax
import jax.numpy as jnp
from jax.experimental import pallas as pl
from jax.experimental.pallas import tpu as pltpu

EPS = 1e-5


def _round_up(x, m):
    return (x + m - 1) // m * m


# ---------------------------------------------------------------------------
# Pallas kernels
# ---------------------------------------------------------------------------
def _stats_kernel(x_ref, s_ref, ss_ref):
    """Tiled per-channel sum / sum-of-squares; accumulates into resident outputs."""
    @pl.when(pl.program_id(0) == 0)
    def _init():
        s_ref[...] = jnp.zeros_like(s_ref)
        ss_ref[...] = jnp.zeros_like(ss_ref)

    x = x_ref[...]
    s_ref[...] += jnp.sum(x, axis=0, keepdims=True)
    ss_ref[...] += jnp.sum(x * x, axis=0, keepdims=True)


def _affine_kernel(x_ref, scale_ref, shift_ref, o_ref, *, relu):
    """y = x * scale + shift (per channel), optional ReLU — BN affine form (f32)."""
    y = x_ref[...] * scale_ref[...] + shift_ref[...]
    if relu:
        y = jnp.maximum(y, 0.0)
    o_ref[...] = y


def _mm_kernel(*refs, has_bias, has_residual):
    """Tiled matmul with f32 accumulator; bias / residual fused on last K step."""
    it = iter(refs)
    a_ref = next(it)
    b_ref = next(it)
    bias_ref = next(it) if has_bias else None
    res_ref = next(it) if has_residual else None
    o_ref = next(it)
    acc_ref = next(it)

    k = pl.program_id(2)

    @pl.when(k == 0)
    def _init():
        acc_ref[...] = jnp.zeros_like(acc_ref)

    acc_ref[...] += jnp.dot(a_ref[...], b_ref[...],
                            preferred_element_type=jnp.float32)

    @pl.when(k == pl.num_programs(2) - 1)
    def _finalize():
        out = acc_ref[...]
        if has_bias:
            out = out + bias_ref[...]
        if has_residual:
            out = out + res_ref[...]
        o_ref[...] = out.astype(o_ref.dtype)


# ---------------------------------------------------------------------------
# pallas_call wrappers
# ---------------------------------------------------------------------------
def batch_stats(x2d):
    """Per-channel mean / biased variance of a (M, C) f32 array, tiled over M."""
    M, C = x2d.shape
    tm = min(256, _round_up(M, 8))
    m_pad = _round_up(M, tm)
    if m_pad != M:                       # zero rows do not perturb sums
        x2d = jnp.pad(x2d, ((0, m_pad - M), (0, 0)))

    s, ss = pl.pallas_call(
        _stats_kernel,
        grid=(m_pad // tm,),
        in_specs=[pl.BlockSpec((tm, C), lambda i: (i, 0))],
        out_specs=[pl.BlockSpec((1, C), lambda i: (0, 0)),
                   pl.BlockSpec((1, C), lambda i: (0, 0))],
        out_shape=[jax.ShapeDtypeStruct((1, C), jnp.float32),
                   jax.ShapeDtypeStruct((1, C), jnp.float32)],
        compiler_params=pltpu.CompilerParams(
            dimension_semantics=("arbitrary",)),     # reduction axis
    )(x2d)

    inv_m = 1.0 / float(M)
    mean = s * inv_m
    var = jnp.maximum(ss * inv_m - mean * mean, 0.0)   # clamp vs. cancellation
    return mean, var


def affine(x2d, scale, shift, relu):
    """Tiled BN affine (+ ReLU): y = x*scale + shift, per channel, f32."""
    M, C = x2d.shape
    tm = min(256, _round_up(M, 8))
    m_pad = _round_up(M, tm)
    xp = jnp.pad(x2d, ((0, m_pad - M), (0, 0))) if m_pad != M else x2d

    out = pl.pallas_call(
        functools.partial(_affine_kernel, relu=relu),
        grid=(m_pad // tm,),
        in_specs=[pl.BlockSpec((tm, C), lambda i: (i, 0)),
                  pl.BlockSpec((1, C), lambda i: (0, 0)),
                  pl.BlockSpec((1, C), lambda i: (0, 0))],
        out_specs=pl.BlockSpec((tm, C), lambda i: (i, 0)),
        out_shape=jax.ShapeDtypeStruct((m_pad, C), jnp.float32),
        compiler_params=pltpu.CompilerParams(
            dimension_semantics=("parallel",)),
    )(xp, scale, shift)
    return out[:M]


def matmul(a, b, bias=None, residual=None, operand_dtype=jnp.float32):
    """out = a @ b (+ bias) (+ residual), MXU-tiled, f32 accumulation.

    a: (M, K), b: (K, N), bias: (N,), residual: (M, N).  Returns (M, N) f32.
    K and N are zero-padded to multiples of 128 (lane-dense), M to the M-tile.
    """
    M, K = a.shape
    K2, N = b.shape
    assert K == K2

    # --- tile sizes (per-step VMEM footprint stays a few MiB << 32 MiB) -----
    tm = 256 if M >= 256 else _round_up(M, 16)
    m_pad = _round_up(M, tm)
    n_pad = _round_up(N, 128)
    tn = 256 if (n_pad % 256 == 0 and n_pad >= 256) else 128
    if K <= 512:
        tk = k_pad = _round_up(K, 128)
    else:
        tk = 512
        k_pad = _round_up(K, tk)

    f32 = jnp.float32
    # Zero-filled padding so padded K columns / M rows do not pollute the sums.
    a_p = jnp.pad(a, ((0, m_pad - M), (0, k_pad - K))).astype(operand_dtype)
    b_p = jnp.pad(b, ((0, k_pad - K), (0, n_pad - N))).astype(operand_dtype)

    in_arrays = [a_p, b_p]
    in_specs = [pl.BlockSpec((tm, tk), lambda i, j, k: (i, k)),
                pl.BlockSpec((tk, tn), lambda i, j, k: (k, j))]

    has_bias = bias is not None
    has_residual = residual is not None
    if has_bias:
        bias_p = jnp.pad(bias.reshape(1, N).astype(f32),
                         ((0, 0), (0, n_pad - N)))
        in_arrays.append(bias_p)
        in_specs.append(pl.BlockSpec((1, tn), lambda i, j, k: (0, j)))
    if has_residual:
        res_p = jnp.pad(residual.astype(f32),
                        ((0, m_pad - M), (0, n_pad - N)))
        in_arrays.append(res_p)
        in_specs.append(pl.BlockSpec((tm, tn), lambda i, j, k: (i, j)))

    bytes_el = jnp.dtype(operand_dtype).itemsize
    cost = pl.CostEstimate(
        flops=2 * m_pad * k_pad * n_pad,
        transcendentals=0,
        bytes_accessed=(m_pad * k_pad + k_pad * n_pad) * bytes_el
        + m_pad * n_pad * 4 * (1 + int(has_residual)),
    )

    out = pl.pallas_call(
        functools.partial(_mm_kernel, has_bias=has_bias,
                          has_residual=has_residual),
        grid=(m_pad // tm, n_pad // tn, k_pad // tk),
        in_specs=in_specs,
        out_specs=pl.BlockSpec((tm, tn), lambda i, j, k: (i, j)),
        out_shape=jax.ShapeDtypeStruct((m_pad, n_pad), f32),
        scratch_shapes=[pltpu.VMEM((tm, tn), f32)],
        compiler_params=pltpu.CompilerParams(
            # M/N tiles independent -> sharded across the 2 TCs on v7x;
            # K is the reduction axis (accumulator) -> sequential.
            dimension_semantics=("parallel", "parallel", "arbitrary")),
        cost_estimate=cost,
    )(*in_arrays)
    return out[:M, :N]


# ---------------------------------------------------------------------------
# Building blocks (data-movement glue in XLA, compute in Pallas)
# ---------------------------------------------------------------------------
def bn_scale_shift(mean, var, gamma, beta):
    scale = gamma[None, :] * jax.lax.rsqrt(var + EPS)
    shift = beta[None, :] - mean * scale
    return scale, shift


def _im2col3x3(a_nhwc, stride):
    """pad=1 3x3 im2col: (N,H,W,C) -> (N*Ho*Wo, 9*C). Pure data rearrangement."""
    N, H, W, C = a_nhwc.shape
    Ho = (H + 2 - 3) // stride + 1
    Wo = (W + 2 - 3) // stride + 1
    ap = jnp.pad(a_nhwc, ((0, 0), (1, 1), (1, 1), (0, 0)))
    taps = []
    for kh in range(3):
        for kw in range(3):
            taps.append(ap[:, kh:kh + stride * (Ho - 1) + 1:stride,
                           kw:kw + stride * (Wo - 1) + 1:stride, :])
    patches = jnp.stack(taps, axis=3)                  # (N, Ho, Wo, 9, C)
    return patches.reshape(N * Ho * Wo, 9 * C), (N, Ho, Wo)


def conv3x3_pallas(a_nhwc, w_hwio, stride, residual2d=None,
                   operand_dtype=jnp.float32):
    patches, (N, Ho, Wo) = _im2col3x3(a_nhwc, stride)
    kh, kw, cin, cout = w_hwio.shape
    w2d = w_hwio.reshape(kh * kw * cin, cout)
    out2d = matmul(patches, w2d, residual=residual2d,
                   operand_dtype=operand_dtype)        # Pallas MXU matmul
    return out2d, (N, Ho, Wo)


@functools.partial(jax.jit, static_argnames=("reduce", "operand_dtype"))
def preact_basic_block(x_nchw, params, *, reduce, operand_dtype=jnp.float32):
    """Forward of PreActBasicBlock. Input/output in PyTorch NCHW layout."""
    x = jnp.transpose(x_nchw, (0, 2, 3, 1)).astype(jnp.float32)  # -> NHWC
    N, H, W, Cin = x.shape
    Cout = params["w1"].shape[-1]
    stride = 2 if reduce else 1
    x2d = x.reshape(N * H * W, Cin)

    # Batch statistics of x — shared by bn1 and the shortcut BN (training
    # mode: both see the same batch of x, so one Pallas stats pass suffices).
    mean_x, var_x = batch_stats(x2d)

    # a1 = relu(bn1(x))
    s1, b1 = bn_scale_shift(mean_x, var_x, params["bn1_g"], params["bn1_b"])
    a1 = affine(x2d, s1, b1, relu=True).reshape(N, H, W, Cin)

    # out1 = conv1(a1)
    out1_2d, (_, Ho, Wo) = conv3x3_pallas(a1, params["w1"], stride,
                                          operand_dtype=operand_dtype)
    M1 = N * Ho * Wo

    # a2 = relu(bn2(out1))
    mean1, var1 = batch_stats(out1_2d)
    s2, b2 = bn_scale_shift(mean1, var1, params["bn2_g"], params["bn2_b"])
    a2 = affine(out1_2d, s2, b2, relu=True).reshape(N, Ho, Wo, Cout)

    # shortcut(x): BN (no ReLU) folded exactly into the 1x1-conv:
    #   conv1x1(x*s + b) == x @ (s*W) + b@W  (bias added inside the matmul).
    if reduce or Cin != Cout:
        ssc, bsc = bn_scale_shift(mean_x, var_x,
                                  params["bnsc_g"], params["bnsc_b"])
        xs = x[:, ::stride, ::stride, :].reshape(M1, Cin)
        w_sc = ssc.reshape(Cin, 1) * params["wsc"]
        bias_sc = (bsc.reshape(1, Cin) @ params["wsc"]).reshape(Cout)
        sc2d = matmul(xs, w_sc, bias=bias_sc, operand_dtype=operand_dtype)
    else:
        sc2d = x2d                                     # identity shortcut

    # out = conv2(a2) + shortcut  (residual add fused on last K step)
    out2d, _ = conv3x3_pallas(a2, params["w2"], 1, residual2d=sc2d,
                              operand_dtype=operand_dtype)
    out = out2d.reshape(N, Ho, Wo, Cout)
    return jnp.transpose(out, (0, 3, 1, 2))            # -> NCHW


# ---------------------------------------------------------------------------
# Pure-JAX reference (for correctness check only)
# ---------------------------------------------------------------------------
def ref_block(x_nchw, params, reduce):
    def bn(x, g, b):
        m = jnp.mean(x, axis=(0, 2, 3), keepdims=True)
        v = jnp.mean((x - m) ** 2, axis=(0, 2, 3), keepdims=True)
        return ((x - m) * jax.lax.rsqrt(v + EPS) * g.reshape(1, -1, 1, 1)
                + b.reshape(1, -1, 1, 1))

    def conv(x, w_hwio, stride, pad):
        return jax.lax.conv_general_dilated(
            x, w_hwio, (stride, stride), [(pad, pad), (pad, pad)],
            dimension_numbers=("NCHW", "HWIO", "NCHW"))

    stride = 2 if reduce else 1
    Cin = x_nchw.shape[1]
    Cout = params["w1"].shape[-1]
    out = conv(jax.nn.relu(bn(x_nchw, params["bn1_g"], params["bn1_b"])),
               params["w1"], stride, 1)
    out = conv(jax.nn.relu(bn(out, params["bn2_g"], params["bn2_b"])),
               params["w2"], 1, 1)
    if reduce or Cin != Cout:
        sc = conv(bn(x_nchw, params["bnsc_g"], params["bnsc_b"]),
                  params["wsc"].reshape(1, 1, Cin, Cout), stride, 0)
    else:
        sc = x_nchw
    return out + sc


# ---------------------------------------------------------------------------
if __name__ == "__main__":
    key = jax.random.PRNGKey(0)
    ks = jax.random.split(key, 16)

    # ---- config 1: stride-2 block with projection shortcut -----------------
    N, Cin, Cout, H, W = 2, 4, 8, 16, 16
    x = jax.random.normal(ks[0], (N, Cin, H, W), jnp.float32)
    params = dict(
        bn1_g=1.0 + 0.1 * jax.random.normal(ks[1], (Cin,), jnp.float32),
        bn1_b=0.1 * jax.random.normal(ks[2], (Cin,), jnp.float32),
        w1=0.2 * jax.random.normal(ks[3], (3, 3, Cin, Cout), jnp.float32),
        bn2_g=1.0 + 0.1 * jax.random.normal(ks[4], (Cout,), jnp.float32),
        bn2_b=0.1 * jax.random.normal(ks[5], (Cout,), jnp.float32),
        w2=0.2 * jax.random.normal(ks[6], (3, 3, Cout, Cout), jnp.float32),
        bnsc_g=jnp.ones((Cin,), jnp.float32),
        bnsc_b=jnp.zeros((Cin,), jnp.float32),
        wsc=0.2 * jax.random.normal(ks[7], (Cin, Cout), jnp.float32),
    )

    ref = ref_block(x, params, True)
    out = jax.block_until_ready(preact_basic_block(x, params, reduce=True))
    assert out.shape == (N, Cout, H // 2, W // 2), out.shape
    assert jnp.allclose(out, ref, atol=2e-4, rtol=2e-4), \
        float(jnp.max(jnp.abs(out - ref)))

    # bf16 MXU operands (f32 accumulation): relative-Frobenius check.
    out_bf = jax.block_until_ready(
        preact_basic_block(x, params, reduce=True, operand_dtype=jnp.bfloat16))
    rel = float(jnp.linalg.norm(out_bf - ref) / jnp.linalg.norm(ref))
    assert rel < 2e-2, rel

    # ---- config 2: stride-1 block with identity shortcut -------------------
    C2 = 8
    x2 = jax.random.normal(ks[8], (N, C2, H, W), jnp.float32)
    params2 = dict(
        bn1_g=1.0 + 0.1 * jax.random.normal(ks[9], (C2,), jnp.float32),
        bn1_b=0.1 * jax.random.normal(ks[10], (C2,), jnp.float32),
        w1=0.2 * jax.random.normal(ks[11], (3, 3, C2, C2), jnp.float32),
        bn2_g=1.0 + 0.1 * jax.random.normal(ks[12], (C2,), jnp.float32),
        bn2_b=0.1 * jax.random.normal(ks[13], (C2,), jnp.float32),
        w2=0.2 * jax.random.normal(ks[14], (3, 3, C2, C2), jnp.float32),
    )
    ref2 = ref_block(x2, params2, False)
    out2 = jax.block_until_ready(preact_basic_block(x2, params2, reduce=False))
    assert out2.shape == (N, C2, H, W), out2.shape
    assert jnp.allclose(out2, ref2, atol=2e-4, rtol=2e-4), \
        float(jnp.max(jnp.abs(out2 - ref2)))

    print("KERNEL_OK")
</pallas_src>

<mosaic_0001>
module attributes {stable_mosaic.version = 11 : i64} {
  func.func @_stats_kernel(%arg0: i32, %arg1: memref<256x4xf32, #tpu.memory_space<vmem>>, %arg2: memref<1x4xf32, #tpu.memory_space<vmem>>, %arg3: memref<1x4xf32, #tpu.memory_space<vmem>>) attributes {dimension_semantics = [#tpu.dimension_semantics<arbitrary>], iteration_bounds = array<i64: 2>, scalar_prefetch = 0 : i64, scratch_operands = 0 : i64, tpu.core_type = #tpu.core_type<tc>, window_params = [{transform_indices = @transform_0, window_bounds = array<i64: 256, 4>}, {pipeline_mode = #tpu.pipeline_mode<synchronous>, transform_indices = @transform_1, window_bounds = array<i64: 1, 4>}, {pipeline_mode = #tpu.pipeline_mode<synchronous>, transform_indices = @transform_2, window_bounds = array<i64: 1, 4>}]} {
    %c0_i32 = arith.constant 0 : i32
    %0 = arith.cmpi eq, %arg0, %c0_i32 : i32
    %1 = arith.extui %0 : i1 to i32
    %c0_i32_0 = arith.constant 0 : i32
    %2 = arith.cmpi ne, %1, %c0_i32_0 : i32
    scf.if %2 {
      %cst_11 = arith.constant 0.000000e+00 : f32
      %15 = vector.broadcast %cst_11 : f32 to vector<1x4xf32>
      %c0_12 = arith.constant 0 : index
      %c0_13 = arith.constant 0 : index
      %16 = vector.load %arg2[%c0_12, %c0_13] : memref<1x4xf32, #tpu.memory_space<vmem>>, vector<1x4xf32>
      tpu.vector_store %arg2[%c0_12, %c0_13], %15 {strides = array<i32>} : memref<1x4xf32, #tpu.memory_space<vmem>>, vector<1x4xf32>,
      %cst_14 = arith.constant 0.000000e+00 : f32
      %17 = vector.broadcast %cst_14 : f32 to vector<1x4xf32>
      %c0_15 = arith.constant 0 : index
      %c0_16 = arith.constant 0 : index
      %18 = vector.load %arg3[%c0_15, %c0_16] : memref<1x4xf32, #tpu.memory_space<vmem>>, vector<1x4xf32>
      tpu.vector_store %arg3[%c0_15, %c0_16], %17 {strides = array<i32>} : memref<1x4xf32, #tpu.memory_space<vmem>>, vector<1x4xf32>,
    } else {
    }
    %c0 = arith.constant 0 : index
    %c0_1 = arith.constant 0 : index
    %3 = vector.load %arg1[%c0, %c0_1] : memref<256x4xf32, #tpu.memory_space<vmem>>, vector<256x4xf32>
    %c0_2 = arith.constant 0 : index
    %c0_3 = arith.constant 0 : index
    %4 = vector.load %arg2[%c0_2, %c0_3] : memref<1x4xf32, #tpu.memory_space<vmem>>, vector<1x4xf32>
    %cst = arith.constant dense<0.000000e+00> : vector<4xf32>
    %5 = vector.multi_reduction <add>, %3, %cst [0] : vector<256x4xf32> to vector<4xf32>
    %6 = vector.shape_cast %5 : vector<4xf32> to vector<1x4xf32>
    %7 = arith.addf %4, %6 : vector<1x4xf32>
    %c0_4 = arith.constant 0 : index
    %c0_5 = arith.constant 0 : index
    %8 = vector.load %arg2[%c0_4, %c0_5] : memref<1x4xf32, #tpu.memory_space<vmem>>, vector<1x4xf32>
    tpu.vector_store %arg2[%c0_4, %c0_5], %7 {strides = array<i32>} : memref<1x4xf32, #tpu.memory_space<vmem>>, vector<1x4xf32>,
    %c0_6 = arith.constant 0 : index
    %c0_7 = arith.constant 0 : index
    %9 = vector.load %arg3[%c0_6, %c0_7] : memref<1x4xf32, #tpu.memory_space<vmem>>, vector<1x4xf32>
    %10 = arith.mulf %3, %3 : vector<256x4xf32>
    %cst_8 = arith.constant dense<0.000000e+00> : vector<4xf32>
    %11 = vector.multi_reduction <add>, %10, %cst_8 [0] : vector<256x4xf32> to vector<4xf32>
    %12 = vector.shape_cast %11 : vector<4xf32> to vector<1x4xf32>
    %13 = arith.addf %9, %12 : vector<1x4xf32>
    %c0_9 = arith.constant 0 : index
    %c0_10 = arith.constant 0 : index
    %14 = vector.load %arg3[%c0_9, %c0_10] : memref<1x4xf32, #tpu.memory_space<vmem>>, vector<1x4xf32>
    tpu.vector_store %arg3[%c0_9, %c0_10], %13 {strides = array<i32>} : memref<1x4xf32, #tpu.memory_space<vmem>>, vector<1x4xf32>,
    return
  }
  func.func @transform_0(%arg0: i32) -> (i32, i32) {
    %c0_i32 = arith.constant 0 : i32
    %c0_i32_0 = arith.constant 0 : i32
    return %arg0, %c0_i32 : i32, i32
  }
  func.func @transform_1(%arg0: i32) -> (i32, i32) {
    %c0_i32 = arith.constant 0 : i32
    %c0_i32_0 = arith.constant 0 : i32
    %c0_i32_1 = arith.constant 0 : i32
    return %c0_i32, %c0_i32_0 : i32, i32
  }
  func.func @transform_2(%arg0: i32) -> (i32, i32) {
    %c0_i32 = arith.constant 0 : i32
    %c0_i32_0 = arith.constant 0 : i32
    %c0_i32_1 = arith.constant 0 : i32
    return %c0_i32, %c0_i32_0 : i32, i32
  }
}

module attributes {stable_mosaic.version = 11 : i64} {
  func.func @_affine_kernel(%arg0: i32, %arg1: memref<256x4xf32, #tpu.memory_space<vmem>>, %arg2: memref<1x4xf32, #tpu.memory_space<vmem>>, %arg3: memref<1x4xf32, #tpu.memory_space<vmem>>, %arg4: memref<256x4xf32, #tpu.memory_space<vmem>>) attributes {dimension_semantics = [#tpu.dimension_semantics<parallel>], iteration_bounds = array<i64: 2>, scalar_prefetch = 0 : i64, scratch_operands = 0 : i64, tpu.core_type = #tpu.core_type<tc>, window_params = [{transform_indices = @transform_0, window_bounds = array<i64: 256, 4>}, {pipeline_mode = #tpu.pipeline_mode<synchronous>, transform_indices = @transform_1, window_bounds = array<i64: 1, 4>}, {pipeline_mode = #tpu.pipeline_mode<synchronous>, transform_indices = @transform_2, window_bounds = array<i64: 1, 4>}, {transform_indices = @transform_3, window_bounds = array<i64: 256, 4>}]} {
    %c0 = arith.constant 0 : index
    %c0_0 = arith.constant 0 : index
    %0 = vector.load %arg1[%c0, %c0_0] : memref<256x4xf32, #tpu.memory_space<vmem>>, vector<256x4xf32>
    %c0_1 = arith.constant 0 : index
    %c0_2 = arith.constant 0 : index
    %1 = vector.load %arg2[%c0_1, %c0_2] : memref<1x4xf32, #tpu.memory_space<vmem>>, vector<1x4xf32>
    %2 = vector.broadcast %1 : vector<1x4xf32> to vector<256x4xf32>
    %3 = arith.mulf %0, %2 : vector<256x4xf32>
    %c0_3 = arith.constant 0 : index
    %c0_4 = arith.constant 0 : index
    %4 = vector.load %arg3[%c0_3, %c0_4] : memref<1x4xf32, #tpu.memory_space<vmem>>, vector<1x4xf32>
    %5 = vector.broadcast %4 : vector<1x4xf32> to vector<256x4xf32>
    %6 = arith.addf %3, %5 : vector<256x4xf32>
    %cst = arith.constant 0.000000e+00 : f32
    %7 = vector.broadcast %cst : f32 to vector<256x4xf32>
    %8 = arith.maximumf %6, %7 : vector<256x4xf32>
    %c0_5 = arith.constant 0 : index
    %c0_6 = arith.constant 0 : index
    %9 = vector.load %arg4[%c0_5, %c0_6] : memref<256x4xf32, #tpu.memory_space<vmem>>, vector<256x4xf32>
    tpu.vector_store %arg4[%c0_5, %c0_6], %8 {strides = array<i32>} : memref<256x4xf32, #tpu.memory_space<vmem>>, vector<256x4xf32>,
    return
  }
  func.func @transform_0(%arg0: i32) -> (i32, i32) {
    %c0_i32 = arith.constant 0 : i32
    %c0_i32_0 = arith.constant 0 : i32
    return %arg0, %c0_i32 : i32, i32
  }
  func.func @transform_1(%arg0: i32) -> (i32, i32) {
    %c0_i32 = arith.constant 0 : i32
    %c0_i32_0 = arith.constant 0 : i32
    %c0_i32_1 = arith.constant 0 : i32
    return %c0_i32, %c0_i32_0 : i32, i32
  }
  func.func @transform_2(%arg0: i32) -> (i32, i32) {
    %c0_i32 = arith.constant 0 : i32
    %c0_i32_0 = arith.constant 0 : i32
    %c0_i32_1 = arith.constant 0 : i32
    return %c0_i32, %c0_i32_0 : i32, i32
  }
  func.func @transform_3(%arg0: i32) -> (i32, i32) {
    %c0_i32 = arith.constant 0 : i32
    %c0_i32_0 = arith.constant 0 : i32
    return %arg0, %c0_i32 : i32, i32
  }
}

module attributes {stable_mosaic.version = 11 : i64} {
  func.func @_affine_kernel(%arg0: i32, %arg1: memref<128x8xf32, #tpu.memory_space<vmem>>, %arg2: memref<1x8xf32, #tpu.memory_space<vmem>>, %arg3: memref<1x8xf32, #tpu.memory_space<vmem>>, %arg4: memref<128x8xf32, #tpu.memory_space<vmem>>) attributes {dimension_semantics = [#tpu.dimension_semantics<parallel>], iteration_bounds = array<i64: 1>, scalar_prefetch = 0 : i64, scratch_operands = 0 : i64, tpu.core_type = #tpu.core_type<tc>, window_params = [{transform_indices = @transform_0, window_bounds = array<i64: 128, 8>}, {pipeline_mode = #tpu.pipeline_mode<synchronous>, transform_indices = @transform_1, window_bounds = array<i64: 1, 8>}, {pipeline_mode = #tpu.pipeline_mode<synchronous>, transform_indices = @transform_2, window_bounds = array<i64: 1, 8>}, {transform_indices = @transform_3, window_bounds = array<i64: 128, 8>}]} {
    %c0 = arith.constant 0 : index
    %c0_0 = arith.constant 0 : index
    %0 = vector.load %arg1[%c0, %c0_0] : memref<128x8xf32, #tpu.memory_space<vmem>>, vector<128x8xf32>
    %c0_1 = arith.constant 0 : index
    %c0_2 = arith.constant 0 : index
    %1 = vector.load %arg2[%c0_1, %c0_2] : memref<1x8xf32, #tpu.memory_space<vmem>>, vector<1x8xf32>
    %2 = vector.broadcast %1 : vector<1x8xf32> to vector<128x8xf32>
    %3 = arith.mulf %0, %2 : vector<128x8xf32>
    %c0_3 = arith.constant 0 : index
    %c0_4 = arith.constant 0 : index
    %4 = vector.load %arg3[%c0_3, %c0_4] : memref<1x8xf32, #tpu.memory_space<vmem>>, vector<1x8xf32>
    %5 = vector.broadcast %4 : vector<1x8xf32> to vector<128x8xf32>
    %6 = arith.addf %3, %5 : vector<128x8xf32>
    %cst = arith.constant 0.000000e+00 : f32
    %7 = vector.broadcast %cst : f32 to vector<128x8xf32>
    %8 = arith.maximumf %6, %7 : vector<128x8xf32>
    %c0_5 = arith.constant 0 : index
    %c0_6 = arith.constant 0 : index
    %9 = vector.load %arg4[%c0_5, %c0_6] : memref<128x8xf32, #tpu.memory_space<vmem>>, vector<128x8xf32>
    tpu.vector_store %arg4[%c0_5, %c0_6], %8 {strides = array<i32>} : memref<128x8xf32, #tpu.memory_space<vmem>>, vector<128x8xf32>,
    return
  }
  func.func @transform_0(%arg0: i32) -> (i32, i32) {
    %c0_i32 = arith.constant 0 : i32
    %c0_i32_0 = arith.constant 0 : i32
    return %arg0, %c0_i32 : i32, i32
  }
  func.func @transform_1(%arg0: i32) -> (i32, i32) {
    %c0_i32 = arith.constant 0 : i32
    %c0_i32_0 = arith.constant 0 : i32
    %c0_i32_1 = arith.constant 0 : i32
    return %c0_i32, %c0_i32_0 : i32, i32
  }
  func.func @transform_2(%arg0: i32) -> (i32, i32) {
    %c0_i32 = arith.constant 0 : i32
    %c0_i32_0 = arith.constant 0 : i32
    %c0_i32_1 = arith.constant 0 : i32
    return %c0_i32, %c0_i32_0 : i32, i32
  }
  func.func @transform_3(%arg0: i32) -> (i32, i32) {
    %c0_i32 = arith.constant 0 : i32
    %c0_i32_0 = arith.constant 0 : i32
    return %arg0, %c0_i32 : i32, i32
  }
}

module attributes {stable_mosaic.version = 11 : i64} {
  func.func @_mm_kernel(%arg0: i32, %arg1: i32, %arg2: i32, %arg3: memref<128x128xf32, #tpu.memory_space<vmem>>, %arg4: memref<128x128xf32, #tpu.memory_space<vmem>>, %arg5: memref<128x128xf32, #tpu.memory_space<vmem>>, %arg6: memref<128x128xf32, #tpu.memory_space<vmem>>) attributes {dimension_semantics = [#tpu.dimension_semantics<parallel>, #tpu.dimension_semantics<parallel>, #tpu.dimension_semantics<arbitrary>], iteration_bounds = array<i64: 1, 1, 1>, scalar_prefetch = 0 : i64, scratch_operands = 1 : i64, tpu.core_type = #tpu.core_type<tc>, window_params = [{transform_indices = @transform_0, window_bounds = array<i64: 128, 128>}, {transform_indices = @transform_1, window_bounds = array<i64: 128, 128>}, {transform_indices = @transform_2, window_bounds = array<i64: 128, 128>}]} {
    %c0_i32 = arith.constant 0 : i32
    %0 = arith.cmpi eq, %arg2, %c0_i32 : i32
    %1 = arith.extui %0 : i1 to i32
    %c0_i32_0 = arith.constant 0 : i32
    %2 = arith.cmpi ne, %1, %c0_i32_0 : i32
    scf.if %2 {
      %cst_10 = arith.constant 0.000000e+00 : f32
      %12 = vector.broadcast %cst_10 : f32 to vector<128x128xf32>
      %c0_11 = arith.constant 0 : index
      %c0_12 = arith.constant 0 : index
      %13 = vector.load %arg6[%c0_11, %c0_12] : memref<128x128xf32, #tpu.memory_space<vmem>>, vector<128x128xf32>
      tpu.vector_store %arg6[%c0_11, %c0_12], %12 {strides = array<i32>} : memref<128x128xf32, #tpu.memory_space<vmem>>, vector<128x128xf32>,
    } else {
    }
    %c0 = arith.constant 0 : index
    %c0_1 = arith.constant 0 : index
    %3 = vector.load %arg6[%c0, %c0_1] : memref<128x128xf32, #tpu.memory_space<vmem>>, vector<128x128xf32>
    %c0_2 = arith.constant 0 : index
    %c0_3 = arith.constant 0 : index
    %4 = vector.load %arg3[%c0_2, %c0_3] : memref<128x128xf32, #tpu.memory_space<vmem>>, vector<128x128xf32>
    %c0_4 = arith.constant 0 : index
    %c0_5 = arith.constant 0 : index
    %5 = vector.load %arg4[%c0_4, %c0_5] : memref<128x128xf32, #tpu.memory_space<vmem>>, vector<128x128xf32>
    %cst = arith.constant dense<0.000000e+00> : vector<128x128xf32>
    %6 = tpu.matmul %4, %5, %cst {dimension_numbers = #tpu.dot_dimension_numbers<[1], [0], [0], [1], [0, 0, 1, 1], [], []>} : vector<128x128xf32>, vector<128x128xf32>, vector<128x128xf32> -> vector<128x128xf32>
    %7 = arith.addf %3, %6 : vector<128x128xf32>
    %c0_6 = arith.constant 0 : index
    %c0_7 = arith.constant 0 : index
    %8 = vector.load %arg6[%c0_6, %c0_7] : memref<128x128xf32, #tpu.memory_space<vmem>>, vector<128x128xf32>
    tpu.vector_store %arg6[%c0_6, %c0_7], %7 {strides = array<i32>} : memref<128x128xf32, #tpu.memory_space<vmem>>, vector<128x128xf32>,
    %c0_i32_8 = arith.constant 0 : i32
    %9 = arith.cmpi eq, %arg2, %c0_i32_8 : i32
    %10 = arith.extui %9 : i1 to i32
    %c0_i32_9 = arith.constant 0 : i32
    %11 = arith.cmpi ne, %10, %c0_i32_9 : i32
    scf.if %11 {
      %c0_10 = arith.constant 0 : index
      %c0_11 = arith.constant 0 : index
      %12 = vector.load %arg6[%c0_10, %c0_11] : memref<128x128xf32, #tpu.memory_space<vmem>>, vector<128x128xf32>
      %c0_12 = arith.constant 0 : index
      %c0_13 = arith.constant 0 : index
      %13 = vector.load %arg5[%c0_12, %c0_13] : memref<128x128xf32, #tpu.memory_space<vmem>>, vector<128x128xf32>
      tpu.vector_store %arg5[%c0_12, %c0_13], %12 {strides = array<i32>} : memref<128x128xf32, #tpu.memory_space<vmem>>, vector<128x128xf32>,
    } else {
    }
    return
  }
  func.func @transform_0(%arg0: i32, %arg1: i32, %arg2: i32) -> (i32, i32) {
    %c0_i32 = arith.constant 0 : i32
    return %arg0, %arg2 : i32, i32
  }
  func.func @transform_1(%arg0: i32, %arg1: i32, %arg2: i32) -> (i32, i32) {
    %c0_i32 = arith.constant 0 : i32
    return %arg2, %arg1 : i32, i32
  }
  func.func @transform_2(%arg0: i32, %arg1: i32, %arg2: i32) -> (i32, i32) {
    %c0_i32 = arith.constant 0 : i32
    return %arg0, %arg1 : i32, i32
  }
}

module attributes {stable_mosaic.version = 11 : i64} {
  func.func @_stats_kernel(%arg0: i32, %arg1: memref<128x8xf32, #tpu.memory_space<vmem>>, %arg2: memref<1x8xf32, #tpu.memory_space<vmem>>, %arg3: memref<1x8xf32, #tpu.memory_space<vmem>>) attributes {dimension_semantics = [#tpu.dimension_semantics<arbitrary>], iteration_bounds = array<i64: 1>, scalar_prefetch = 0 : i64, scratch_operands = 0 : i64, tpu.core_type = #tpu.core_type<tc>, window_params = [{transform_indices = @transform_0, window_bounds = array<i64: 128, 8>}, {pipeline_mode = #tpu.pipeline_mode<synchronous>, transform_indices = @transform_1, window_bounds = array<i64: 1, 8>}, {pipeline_mode = #tpu.pipeline_mode<synchronous>, transform_indices = @transform_2, window_bounds = array<i64: 1, 8>}]} {
    %c0_i32 = arith.constant 0 : i32
    %0 = arith.cmpi eq, %arg0, %c0_i32 : i32
    %1 = arith.extui %0 : i1 to i32
    %c0_i32_0 = arith.constant 0 : i32
    %2 = arith.cmpi ne, %1, %c0_i32_0 : i32
    scf.if %2 {
      %cst_11 = arith.constant 0.000000e+00 : f32
      %15 = vector.broadcast %cst_11 : f32 to vector<1x8xf32>
      %c0_12 = arith.constant 0 : index
      %c0_13 = arith.constant 0 : index
      %16 = vector.load %arg2[%c0_12, %c0_13] : memref<1x8xf32, #tpu.memory_space<vmem>>, vector<1x8xf32>
      tpu.vector_store %arg2[%c0_12, %c0_13], %15 {strides = array<i32>} : memref<1x8xf32, #tpu.memory_space<vmem>>, vector<1x8xf32>,
      %cst_14 = arith.constant 0.000000e+00 : f32
      %17 = vector.broadcast %cst_14 : f32 to vector<1x8xf32>
      %c0_15 = arith.constant 0 : index
      %c0_16 = arith.constant 0 : index
      %18 = vector.load %arg3[%c0_15, %c0_16] : memref<1x8xf32, #tpu.memory_space<vmem>>, vector<1x8xf32>
      tpu.vector_store %arg3[%c0_15, %c0_16], %17 {strides = array<i32>} : memref<1x8xf32, #tpu.memory_space<vmem>>, vector<1x8xf32>,
    } else {
    }
    %c0 = arith.constant 0 : index
    %c0_1 = arith.constant 0 : index
    %3 = vector.load %arg1[%c0, %c0_1] : memref<128x8xf32, #tpu.memory_space<vmem>>, vector<128x8xf32>
    %c0_2 = arith.constant 0 : index
    %c0_3 = arith.constant 0 : index
    %4 = vector.load %arg2[%c0_2, %c0_3] : memref<1x8xf32, #tpu.memory_space<vmem>>, vector<1x8xf32>
    %cst = arith.constant dense<0.000000e+00> : vector<8xf32>
    %5 = vector.multi_reduction <add>, %3, %cst [0] : vector<128x8xf32> to vector<8xf32>
    %6 = vector.shape_cast %5 : vector<8xf32> to vector<1x8xf32>
    %7 = arith.addf %4, %6 : vector<1x8xf32>
    %c0_4 = arith.constant 0 : index
    %c0_5 = arith.constant 0 : index
    %8 = vector.load %arg2[%c0_4, %c0_5] : memref<1x8xf32, #tpu.memory_space<vmem>>, vector<1x8xf32>
    tpu.vector_store %arg2[%c0_4, %c0_5], %7 {strides = array<i32>} : memref<1x8xf32, #tpu.memory_space<vmem>>, vector<1x8xf32>,
    %c0_6 = arith.constant 0 : index
    %c0_7 = arith.constant 0 : index
    %9 = vector.load %arg3[%c0_6, %c0_7] : memref<1x8xf32, #tpu.memory_space<vmem>>, vector<1x8xf32>
    %10 = arith.mulf %3, %3 : vector<128x8xf32>
    %cst_8 = arith.constant dense<0.000000e+00> : vector<8xf32>
    %11 = vector.multi_reduction <add>, %10, %cst_8 [0] : vector<128x8xf32> to vector<8xf32>
    %12 = vector.shape_cast %11 : vector<8xf32> to vector<1x8xf32>
    %13 = arith.addf %9, %12 : vector<1x8xf32>
    %c0_9 = arith.constant 0 : index
    %c0_10 = arith.constant 0 : index
    %14 = vector.load %arg3[%c0_9, %c0_10] : memref<1x8xf32, #tpu.memory_space<vmem>>, vector<1x8xf32>
    tpu.vector_store %arg3[%c0_9, %c0_10], %13 {strides = array<i32>} : memref<1x8xf32, #tpu.memory_space<vmem>>, vector<1x8xf32>,
    return
  }
  func.func @transform_0(%arg0: i32) -> (i32, i32) {
    %c0_i32 = arith.constant 0 : i32
    %c0_i32_0 = arith.constant 0 : i32
    return %arg0, %c0_i32 : i32, i32
  }
  func.func @transform_1(%arg0: i32) -> (i32, i32) {
    %c0_i32 = arith.constant 0 : i32
    %c0_i32_0 = arith.constant 0 : i32
    %c0_i32_1 = arith.constant 0 : i32
    return %c0_i32, %c0_i32_0 : i32, i32
  }
  func.func @transform_2(%arg0: i32) -> (i32, i32) {
    %c0_i32 = arith.constant 0 : i32
    %c0_i32_0 = arith.constant 0 : i32
    %c0_i32_1 = arith.constant 0 : i32
    return %c0_i32, %c0_i32_0 : i32, i32
  }
}

module attributes {stable_mosaic.version = 11 : i64} {
  func.func @_mm_kernel(%arg0: i32, %arg1: i32, %arg2: i32, %arg3: memref<128x128xf32, #tpu.memory_space<vmem>>, %arg4: memref<128x128xf32, #tpu.memory_space<vmem>>, %arg5: memref<1x128xf32, #tpu.memory_space<vmem>>, %arg6: memref<128x128xf32, #tpu.memory_space<vmem>>, %arg7: memref<128x128xf32, #tpu.memory_space<vmem>>) attributes {dimension_semantics = [#tpu.dimension_semantics<parallel>, #tpu.dimension_semantics<parallel>, #tpu.dimension_semantics<arbitrary>], iteration_bounds = array<i64: 1, 1, 1>, scalar_prefetch = 0 : i64, scratch_operands = 1 : i64, tpu.core_type = #tpu.core_type<tc>, window_params = [{transform_indices = @transform_0, window_bounds = array<i64: 128, 128>}, {transform_indices = @transform_1, window_bounds = array<i64: 128, 128>}, {transform_indices = @transform_2, window_bounds = array<i64: 1, 128>}, {transform_indices = @transform_3, window_bounds = array<i64: 128, 128>}]} {
    %c0_i32 = arith.constant 0 : i32
    %0 = arith.cmpi eq, %arg2, %c0_i32 : i32
    %1 = arith.extui %0 : i1 to i32
    %c0_i32_0 = arith.constant 0 : i32
    %2 = arith.cmpi ne, %1, %c0_i32_0 : i32
    scf.if %2 {
      %cst_10 = arith.constant 0.000000e+00 : f32
      %12 = vector.broadcast %cst_10 : f32 to vector<128x128xf32>
      %c0_11 = arith.constant 0 : index
      %c0_12 = arith.constant 0 : index
      %13 = vector.load %arg7[%c0_11, %c0_12] : memref<128x128xf32, #tpu.memory_space<vmem>>, vector<128x128xf32>
      tpu.vector_store %arg7[%c0_11, %c0_12], %12 {strides = array<i32>} : memref<128x128xf32, #tpu.memory_space<vmem>>, vector<128x128xf32>,
    } else {
    }
    %c0 = arith.constant 0 : index
    %c0_1 = arith.constant 0 : index
    %3 = vector.load %arg7[%c0, %c0_1] : memref<128x128xf32, #tpu.memory_space<vmem>>, vector<128x128xf32>
    %c0_2 = arith.constant 0 : index
    %c0_3 = arith.constant 0 : index
    %4 = vector.load %arg3[%c0_2, %c0_3] : memref<128x128xf32, #tpu.memory_space<vmem>>, vector<128x128xf32>
    %c0_4 = arith.constant 0 : index
    %c0_5 = arith.constant 0 : index
    %5 = vector.load %arg4[%c0_4, %c0_5] : memref<128x128xf32, #tpu.memory_space<vmem>>, vector<128x128xf32>
    %cst = arith.constant dense<0.000000e+00> : vector<128x128xf32>
    %6 = tpu.matmul %4, %5, %cst {dimension_numbers = #tpu.dot_dimension_numbers<[1], [0], [0], [1], [0, 0, 1, 1], [], []>} : vector<128x128xf32>, vector<128x128xf32>, vector<128x128xf32> -> vector<128x128xf32>
    %7 = arith.addf %3, %6 : vector<128x128xf32>
    %c0_6 = arith.constant 0 : index
    %c0_7 = arith.constant 0 : index
    %8 = vector.load %arg7[%c0_6, %c0_7] : memref<128x128xf32, #tpu.memory_space<vmem>>, vector<128x128xf32>
    tpu.vector_store %arg7[%c0_6, %c0_7], %7 {strides = array<i32>} : memref<128x128xf32, #tpu.memory_space<vmem>>, vector<128x128xf32>,
    %c0_i32_8 = arith.constant 0 : i32
    %9 = arith.cmpi eq, %arg2, %c0_i32_8 : i32
    %10 = arith.extui %9 : i1 to i32
    %c0_i32_9 = arith.constant 0 : i32
    %11 = arith.cmpi ne, %10, %c0_i32_9 : i32
    scf.if %11 {
      %c0_10 = arith.constant 0 : index
      %c0_11 = arith.constant 0 : index
      %12 = vector.load %arg7[%c0_10, %c0_11] : memref<128x128xf32, #tpu.memory_space<vmem>>, vector<128x128xf32>
      %c0_12 = arith.constant 0 : index
      %c0_13 = arith.constant 0 : index
      %13 = vector.load %arg5[%c0_12, %c0_13] : memref<1x128xf32, #tpu.memory_space<vmem>>, vector<1x128xf32>
      %14 = vector.broadcast %13 : vector<1x128xf32> to vector<128x128xf32>
      %15 = arith.addf %12, %14 : vector<128x128xf32>
      %c0_14 = arith.constant 0 : index
      %c0_15 = arith.constant 0 : index
      %16 = vector.load %arg6[%c0_14, %c0_15] : memref<128x128xf32, #tpu.memory_space<vmem>>, vector<128x128xf32>
      tpu.vector_store %arg6[%c0_14, %c0_15], %15 {strides = array<i32>} : memref<128x128xf32, #tpu.memory_space<vmem>>, vector<128x128xf32>,
    } else {
    }
    return
  }
  func.func @transform_0(%arg0: i32, %arg1: i32, %arg2: i32) -> (i32, i32) {
    %c0_i32 = arith.constant 0 : i32
    return %arg0, %arg2 : i32, i32
  }
  func.func @transform_1(%arg0: i32, %arg1: i32, %arg2: i32) -> (i32, i32) {
    %c0_i32 = arith.constant 0 : i32
    return %arg2, %arg1 : i32, i32
  }
  func.func @transform_2(%arg0: i32, %arg1: i32, %arg2: i32) -> (i32, i32) {
    %c0_i32 = arith.constant 0 : i32
    %c0_i32_0 = arith.constant 0 : i32
    return %c0_i32, %arg1 : i32, i32
  }
  func.func @transform_3(%arg0: i32, %arg1: i32, %arg2: i32) -> (i32, i32) {
    %c0_i32 = arith.constant 0 : i32
    return %arg0, %arg1 : i32, i32
  }
}

module attributes {stable_mosaic.version = 11 : i64} {
  func.func @_mm_kernel(%arg0: i32, %arg1: i32, %arg2: i32, %arg3: memref<128x128xf32, #tpu.memory_space<vmem>>, %arg4: memref<128x128xf32, #tpu.memory_space<vmem>>, %arg5: memref<128x128xf32, #tpu.memory_space<vmem>>, %arg6: memref<128x128xf32, #tpu.memory_space<vmem>>, %arg7: memref<128x128xf32, #tpu.memory_space<vmem>>) attributes {dimension_semantics = [#tpu.dimension_semantics<parallel>, #tpu.dimension_semantics<parallel>, #tpu.dimension_semantics<arbitrary>], iteration_bounds = array<i64: 1, 1, 1>, scalar_prefetch = 0 : i64, scratch_operands = 1 : i64, tpu.core_type = #tpu.core_type<tc>, window_params = [{transform_indices = @transform_0, window_bounds = array<i64: 128, 128>}, {transform_indices = @transform_1, window_bounds = array<i64: 128, 128>}, {transform_indices = @transform_2, window_bounds = array<i64: 128, 128>}, {transform_indices = @transform_3, window_bounds = array<i64: 128, 128>}]} {
    %c0_i32 = arith.constant 0 : i32
    %0 = arith.cmpi eq, %arg2, %c0_i32 : i32
    %1 = arith.extui %0 : i1 to i32
    %c0_i32_0 = arith.constant 0 : i32
    %2 = arith.cmpi ne, %1, %c0_i32_0 : i32
    scf.if %2 {
      %cst_10 = arith.constant 0.000000e+00 : f32
      %12 = vector.broadcast %cst_10 : f32 to vector<128x128xf32>
      %c0_11 = arith.constant 0 : index
      %c0_12 = arith.constant 0 : index
      %13 = vector.load %arg7[%c0_11, %c0_12] : memref<128x128xf32, #tpu.memory_space<vmem>>, vector<128x128xf32>
      tpu.vector_store %arg7[%c0_11, %c0_12], %12 {strides = array<i32>} : memref<128x128xf32, #tpu.memory_space<vmem>>, vector<128x128xf32>,
    } else {
    }
    %c0 = arith.constant 0 : index
    %c0_1 = arith.constant 0 : index
    %3 = vector.load %arg7[%c0, %c0_1] : memref<128x128xf32, #tpu.memory_space<vmem>>, vector<128x128xf32>
    %c0_2 = arith.constant 0 : index
    %c0_3 = arith.constant 0 : index
    %4 = vector.load %arg3[%c0_2, %c0_3] : memref<128x128xf32, #tpu.memory_space<vmem>>, vector<128x128xf32>
    %c0_4 = arith.constant 0 : index
    %c0_5 = arith.constant 0 : index
    %5 = vector.load %arg4[%c0_4, %c0_5] : memref<128x128xf32, #tpu.memory_space<vmem>>, vector<128x128xf32>
    %cst = arith.constant dense<0.000000e+00> : vector<128x128xf32>
    %6 = tpu.matmul %4, %5, %cst {dimension_numbers = #tpu.dot_dimension_numbers<[1], [0], [0], [1], [0, 0, 1, 1], [], []>} : vector<128x128xf32>, vector<128x128xf32>, vector<128x128xf32> -> vector<128x128xf32>
    %7 = arith.addf %3, %6 : vector<128x128xf32>
    %c0_6 = arith.constant 0 : index
    %c0_7 = arith.constant 0 : index
    %8 = vector.load %arg7[%c0_6, %c0_7] : memref<128x128xf32, #tpu.memory_space<vmem>>, vector<128x128xf32>
    tpu.vector_store %arg7[%c0_6, %c0_7], %7 {strides = array<i32>} : memref<128x128xf32, #tpu.memory_space<vmem>>, vector<128x128xf32>,
    %c0_i32_8 = arith.constant 0 : i32
    %9 = arith.cmpi eq, %arg2, %c0_i32_8 : i32
    %10 = arith.extui %9 : i1 to i32
    %c0_i32_9 = arith.constant 0 : i32
    %11 = arith.cmpi ne, %10, %c0_i32_9 : i32
    scf.if %11 {
      %c0_10 = arith.constant 0 : index
      %c0_11 = arith.constant 0 : index
      %12 = vector.load %arg7[%c0_10, %c0_11] : memref<128x128xf32, #tpu.memory_space<vmem>>, vector<128x128xf32>
      %c0_12 = arith.constant 0 : index
      %c0_13 = arith.constant 0 : index
      %13 = vector.load %arg5[%c0_12, %c0_13] : memref<128x128xf32, #tpu.memory_space<vmem>>, vector<128x128xf32>
      %14 = arith.addf %12, %13 : vector<128x128xf32>
      %c0_14 = arith.constant 0 : index
      %c0_15 = arith.constant 0 : index
      %15 = vector.load %arg6[%c0_14, %c0_15] : memref<128x128xf32, #tpu.memory_space<vmem>>, vector<128x128xf32>
      tpu.vector_store %arg6[%c0_14, %c0_15], %14 {strides = array<i32>} : memref<128x128xf32, #tpu.memory_space<vmem>>, vector<128x128xf32>,
    } else {
    }
    return
  }
  func.func @transform_0(%arg0: i32, %arg1: i32, %arg2: i32) -> (i32, i32) {
    %c0_i32 = arith.constant 0 : i32
    return %arg0, %arg2 : i32, i32
  }
  func.func @transform_1(%arg0: i32, %arg1: i32, %arg2: i32) -> (i32, i32) {
    %c0_i32 = arith.constant 0 : i32
    return %arg2, %arg1 : i32, i32
  }
  func.func @transform_2(%arg0: i32, %arg1: i32, %arg2: i32) -> (i32, i32) {
    %c0_i32 = arith.constant 0 : i32
    return %arg0, %arg1 : i32, i32
  }
  func.func @transform_3(%arg0: i32, %arg1: i32, %arg2: i32) -> (i32, i32) {
    %c0_i32 = arith.constant 0 : i32
    return %arg0, %arg1 : i32, i32
  }
}

</mosaic_0001>

<llo_original>
// kernel: preact_basic_block.8
$region0: #{preact_basic_block.8}
  #allocation0 [shape = 'u32[]', space=smem, size = 0x4, offset = 0x4, fixed_abs, tag = 'smem constant byte address 0x4 - core index']
  #allocation1 [shape = 'u32[144,128]{1,0:T(1,128)}', space=vmem, size = 0x12000, scoped, tag = 'internal scratch']
  %s0 = inlined_call_operand.vmem [shape: f32[512,4], index: 0, kind: input, shape index: {}]
  %s1 = inlined_call_operand.vmem [shape: f32[1,4], index: 1, kind: input, shape index: {}]
  %s2 = inlined_call_operand.vmem [shape: f32[1,4], index: 2, kind: input, shape index: {}]
  %s3 = inlined_call_operand.vmem [shape: f32[512,4], index: 3, kind: output, shape index: {}]
  %s4 = sld [smem:[#allocation0]]
  $region45: #{preact_basic_block.8} parent=0
    _
  %s6 = ssub.s32 1, %s4
  %s7 = scalar_select 0, %s6, %s4
  loop: start=0, step=1, limit=4
  $region2: #{preact_basic_block.8} parent=0 // loop_pre_header
    _
  $region3: #{preact_basic_block.8} parent=0 // loop_header
    %s9 = sphi 0, %s13
    %p10 = scmp.ge.s32.totalorder %s9, 4
    %s19 = sphi 0, %s21
    %s22 = sphi 0, %s19
    %s23 = sphi 0, %s22
    %s39 = sphi 0, %s23
    %s43 = sphi 0, %s43
    %s45 = sphi 0, %s43
    %s46 = sphi 0, %s45
    %s60 = sphi 0, %s46
    %s64 = sphi 0, %s64
    %s66 = sphi 0, %s64
    %s67 = sphi 0, %s66
    %s81 = sphi 0, %s67
    %s87 = sphi 0, %s89
    %s90 = sphi 0, %s87
    %s91 = sphi 0, %s90
    %s107 = sphi 0, %s91
  $region4: #{preact_basic_block.8} parent=0 // loop_header_branch
    %12 = sbr.rel (%p10) target = $region8
  $region5: #{preact_basic_block.8} parent=0 // loop_body
    %s14 = ssub.s32 %s9, 1
    %s15 = ssub.s32 %s9, 2
    %s16 = sadd.s32 %s9, 1
    %s17 = ssub.s32 %s9, %s16
    %p18 = scmp.eq.s32.totalorder %s17, 0
    %s20 = sadd.s32 %s19, 1
    %s21 = scalar_select %p18, %s19, %s20
    %p24 = pneg %p18
    %p25 = scmp.eq.s32.totalorder %s9, 1
    %p26 = por %p24, %p25
    %p27 = scmp.ne.s32.totalorder %s19, %s22
    %p28 = scmp.eq.s32.totalorder %s9, 0
    %p29 = por %p27, %p28
    %p30 = scmp.ne.s32.totalorder %s19, %s22
    %p31 = scmp.eq.s32.totalorder %s14, 1
    %p32 = por %p30, %p31
    %p33 = scmp.ne.s32.totalorder %s22, %s23
    %p34 = scmp.eq.s32.totalorder %s14, 0
    %p35 = por %p33, %p34
    %p36 = scmp.ne.s32.totalorder %s22, %s23
    %p37 = scmp.eq.s32.totalorder %s15, 1
    %p38 = por %p36, %p37
    %p40 = scmp.ne.s32.totalorder %s23, %s39
    %p41 = scmp.eq.s32.totalorder %s15, 0
    %p42 = por %p40, %p41
    %s44 = sadd.s32 %s43, 1
    %p47 = scmp.eq.s32.totalorder %s9, 1
    %p48 = scmp.ne.s32.totalorder %s43, %s45
    %p49 = scmp.eq.s32.totalorder %s9, 0
    %p50 = por %p48, %p49
    %p51 = scmp.ne.s32.totalorder %s43, %s45
    %p52 = scmp.eq.s32.totalorder %s14, 1
    %p53 = por %p51, %p52
    %p54 = scmp.ne.s32.totalorder %s45, %s46
    %p55 = scmp.eq.s32.totalorder %s14, 0
    %p56 = por %p54, %p55
    %p57 = scmp.ne.s32.totalorder %s45, %s46
    %p58 = scmp.eq.s32.totalorder %s15, 1
    %p59 = por %p57, %p58
    %p61 = scmp.ne.s32.totalorder %s46, %s60
    %p62 = scmp.eq.s32.totalorder %s15, 0
    %p63 = por %p61, %p62
    %s65 = sadd.s32 %s64, 1
    %p68 = scmp.eq.s32.totalorder %s9, 1
    %p69 = scmp.ne.s32.totalorder %s64, %s66
    %p70 = scmp.eq.s32.totalorder %s9, 0
    %p71 = por %p69, %p70
    %p72 = scmp.ne.s32.totalorder %s64, %s66
    %p73 = scmp.eq.s32.totalorder %s14, 1
    %p74 = por %p72, %p73
    %p75 = scmp.ne.s32.totalorder %s66, %s67
    %p76 = scmp.eq.s32.totalorder %s14, 0
    %p77 = por %p75, %p76
    %p78 = scmp.ne.s32.totalorder %s66, %s67
    %p79 = scmp.eq.s32.totalorder %s15, 1
    %p80 = por %p78, %p79
    %p82 = scmp.ne.s32.totalorder %s67, %s81
    %p83 = scmp.eq.s32.totalorder %s15, 0
    %p84 = por %p82, %p83
    %s85 = ssub.s32 %s9, %s16
    %p86 = scmp.eq.s32.totalorder %s85, 0
    %s88 = sadd.s32 %s87, 1
    %s89 = scalar_select %p86, %s87, %s88
    %p92 = pneg %p86
    %p93 = scmp.eq.s32.totalorder %s9, 1
    %p94 = por %p92, %p93
    %p95 = scmp.ne.s32.totalorder %s87, %s90
    %p96 = scmp.eq.s32.totalorder %s9, 0
    %p97 = por %p95, %p96
    %p98 = scmp.ne.s32.totalorder %s87, %s90
    %p99 = scmp.eq.s32.totalorder %s14, 1
    %p100 = por %p98, %p99
    %p101 = scmp.ne.s32.totalorder %s90, %s91
    %p102 = scmp.eq.s32.totalorder %s14, 0
    %p103 = por %p101, %p102
    %p104 = scmp.ne.s32.totalorder %s90, %s91
    %p105 = scmp.eq.s32.totalorder %s15, 1
    %p106 = por %p104, %p105
    %p108 = scmp.ne.s32.totalorder %s91, %s107
    %p109 = scmp.eq.s32.totalorder %s15, 0
    %p110 = por %p108, %p109
    %p111 = scmp.le.s32.totalorder 1, %s9
    %p112 = scmp.lt.s32.totalorder %s9, 3
    %p113 = pnand %p111, %p112
    %p114 = pneg %p113
    // Predicated region
    $region9: #{preact_basic_block.8} parent=5 // pred_check
      _
    $region10: #{preact_basic_block.8} parent=5 // pred_check_branch
      %116 = sbr.rel (%p113) target = $region12
    $region11: #{preact_basic_block.8} parent=5 // pred_region
      %s117 = ssub.s32 %s9, 1
      // Predicated region
      $region13: #{preact_basic_block.8} parent=11 // pred_check
        %p118 = pneg %p56
      $region14: #{preact_basic_block.8} parent=11 // pred_check_branch
        %120 = sbr.rel (%p118) target = $region16
      $region15: #{preact_basic_block.8} parent=11 // pred_region
        _
      $region16: #{preact_basic_block.8} parent=11 // pred_fallthru
        _
      // Predicated region
      $region17: #{preact_basic_block.8} parent=11 // pred_check
        %p121 = pneg %p77
      $region18: #{preact_basic_block.8} parent=11 // pred_check_branch
        %123 = sbr.rel (%p121) target = $region20
      $region19: #{preact_basic_block.8} parent=11 // pred_region
        _
      $region20: #{preact_basic_block.8} parent=11 // pred_fallthru
        _
    $region12: #{preact_basic_block.8} parent=5 // pred_fallthru
      _
    %p124 = scmp.lt.s32.totalorder %s9, 2
    // Predicated region
    $region21: #{preact_basic_block.8} parent=5 // pred_check
      %p125 = pneg %p124
    $region22: #{preact_basic_block.8} parent=5 // pred_check_branch
      %127 = sbr.rel (%p125) target = $region24
    $region23: #{preact_basic_block.8} parent=5 // pred_region
      // Predicated region
      $region25: #{preact_basic_block.8} parent=23 // pred_check
        %p128 = pneg %p29
      $region26: #{preact_basic_block.8} parent=23 // pred_check_branch
        %130 = sbr.rel (%p128) target = $region28
      $region27: #{preact_basic_block.8} parent=23 // pred_region
        %s131 = smul.u32 32, %s9
        %p132 = scmp.lt.s32.totalorder %s131, 63
        %s133 = scalar_select %p132, %s131, 63
        %s134 = smul.addr %s133, 8
        %s135 = scalar_lea.vmem %s0, %s134
        %s136 = smul.u32 32, %s9
      $region28: #{preact_basic_block.8} parent=23 // pred_fallthru
        _
    $region24: #{preact_basic_block.8} parent=5 // pred_fallthru
      _
    %p137 = scmp.le.s32.totalorder 1, %s9
    %p138 = scmp.lt.s32.totalorder %s9, 3
    %p139 = pnand %p137, %p138
    %p140 = pneg %p139
    // Predicated region
    $region29: #{preact_basic_block.8} parent=5 // pred_check
      _
    $region30: #{preact_basic_block.8} parent=5 // pred_check_branch
      %142 = sbr.rel (%p139) target = $region32
    $region31: #{preact_basic_block.8} parent=5 // pred_region
      %s143 = ssub.s32 %s9, 1
      %s144 = smul.u32 32, %s14
      %p145 = scmp.lt.s32.totalorder %s144, 63
      %s146 = scalar_select %p145, %s144, 63
      %s147 = smul.addr %s146, 8
      %s148 = scalar_lea.vmem %s0, %s147
      %p149 = pneg %p35
      %p150 = pneg %p32
      %p151 = pneg %p56
      %p152 = pneg %p53
      %p153 = pneg %p77
      %p154 = pneg %p74
      %p155 = pneg %p103
      %p156 = pneg %p100
      %s157 = smul.u32 32, %s14
      %p158 = scmp.lt.s32.totalorder %s157, 63
      %s159 = scalar_select %p158, %s157, 63
      %s160 = smul.addr %s159, 8
      %s161 = scalar_lea.vmem %s3, %s160
      %s162 = smul.u32 32, %s14
      %p163 = scmp.lt.s32.totalorder %s162, 63
      %s164 = scalar_select %p163, %s162, 63
      %s165 = smul.addr %s164, 8
      %s166 = scalar_lea.vmem %s0, %s165
      %s167 = smul.u32 32, %s14
      %s168 = smul.u32 32, %s14
      %p169 = scmp.lt.s32.totalorder %s168, 63
      %s170 = scalar_select %p169, %s168, 63
      %s171 = smul.addr %s170, 8
      %s172 = scalar_lea.vmem %s3, %s171
      %s173 = smul.u32 32, %s14
      %v174 = vld [vmem:[%s166] sm:$0xff]
      %v175 = vld [vmem:[%s166 + $0x8] sm:$0xff]
      %v176 = vld [vmem:[%s166 + $0x10] sm:$0xff]
      %v177 = vld [vmem:[%s166 + $0x18] sm:$0xff]
      %v178 = vld [vmem:[%s166 + $0x20] sm:$0xff]
      %v179 = vld [vmem:[%s166 + $0x28] sm:$0xff]
      %v180 = vld [vmem:[%s166 + $0x30] sm:$0xff]
      %v181 = vld [vmem:[%s166 + $0x38] sm:$0xff]
      %v182 = vld [vmem:[%s166 + $0x40] sm:$0xff]
      %v183 = vld [vmem:[%s166 + $0x48] sm:$0xff]
      %v184 = vld [vmem:[%s166 + $0x50] sm:$0xff]
      %v185 = vld [vmem:[%s166 + $0x58] sm:$0xff]
      %v186 = vld [vmem:[%s166 + $0x60] sm:$0xff]
      %v187 = vld [vmem:[%s166 + $0x68] sm:$0xff]
      %v188 = vld [vmem:[%s166 + $0x70] sm:$0xff]
      %v189 = vld [vmem:[%s166 + $0x78] sm:$0xff]
      %v190 = vld [vmem:[%s166 + $0x80] sm:$0xff]
      %v191 = vld [vmem:[%s166 + $0x88] sm:$0xff]
      %v192 = vld [vmem:[%s166 + $0x90] sm:$0xff]
      %v193 = vld [vmem:[%s166 + $0x98] sm:$0xff]
      %v194 = vld [vmem:[%s166 + $0xa0] sm:$0xff]
      %v195 = vld [vmem:[%s166 + $0xa8] sm:$0xff]
      %v196 = vld [vmem:[%s166 + $0xb0] sm:$0xff]
      %v197 = vld [vmem:[%s166 + $0xb8] sm:$0xff]
      %v198 = vld [vmem:[%s166 + $0xc0] sm:$0xff]
      %v199 = vld [vmem:[%s166 + $0xc8] sm:$0xff]
      %v200 = vld [vmem:[%s166 + $0xd0] sm:$0xff]
      %v201 = vld [vmem:[%s166 + $0xd8] sm:$0xff]
      %v202 = vld [vmem:[%s166 + $0xe0] sm:$0xff]
      %v203 = vld [vmem:[%s166 + $0xe8] sm:$0xff]
      %v204 = vld [vmem:[%s166 + $0xf0] sm:$0xff]
      %v205 = vld [vmem:[%s166 + $0xf8] sm:$0xff]
      %v206 = vld [vmem:[%s1] sm:$0x1]
      %v208 = vlaneseq
      %v209 = vshrl.u32 %v208, 7
      %v210 = vsub.s32 0, %v209
      %v211 = vrot.slane %v206, %v210
      %v213 = vmul.f32 %v174, %v211
      %v214 = vmul.f32 %v175, %v211
      %v215 = vmul.f32 %v176, %v211
      %v216 = vmul.f32 %v177, %v211
      %v217 = vmul.f32 %v178, %v211
      %v218 = vmul.f32 %v179, %v211
      %v219 = vmul.f32 %v180, %v211
      %v220 = vmul.f32 %v181, %v211
      %v221 = vmul.f32 %v182, %v211
      %v222 = vmul.f32 %v183, %v211
      %v223 = vmul.f32 %v184, %v211
      %v224 = vmul.f32 %v185, %v211
      %v225 = vmul.f32 %v186, %v211
      %v226 = vmul.f32 %v187, %v211
      %v227 = vmul.f32 %v188, %v211
      %v228 = vmul.f32 %v189, %v211
      %v229 = vmul.f32 %v190, %v211
      %v230 = vmul.f32 %v191, %v211
      %v231 = vmul.f32 %v192, %v211
      %v232 = vmul.f32 %v193, %v211
      %v233 = vmul.f32 %v194, %v211
      %v234 = vmul.f32 %v195, %v211
      %v235 = vmul.f32 %v196, %v211
      %v236 = vmul.f32 %v197, %v211
      %v237 = vmul.f32 %v198, %v211
      %v238 = vmul.f32 %v199, %v211
      %v239 = vmul.f32 %v200, %v211
      %v240 = vmul.f32 %v201, %v211
      %v241 = vmul.f32 %v202, %v211
      %v242 = vmul.f32 %v203, %v211
      %v243 = vmul.f32 %v204, %v211
      %v244 = vmul.f32 %v205, %v211
      %v245 = vld [vmem:[%s2] sm:$0x1]
      %v247 = vlaneseq
      %v248 = vshrl.u32 %v247, 7
      %v249 = vsub.s32 0, %v248
      %v250 = vrot.slane %v245, %v249
      %v252 = vadd.f32 %v213, %v250
      %v253 = vadd.f32 %v214, %v250
      %v254 = vadd.f32 %v215, %v250
      %v255 = vadd.f32 %v216, %v250
      %v256 = vadd.f32 %v217, %v250
      %v257 = vadd.f32 %v218, %v250
      %v258 = vadd.f32 %v219, %v250
      %v259 = vadd.f32 %v220, %v250
      %v260 = vadd.f32 %v221, %v250
      %v261 = vadd.f32 %v222, %v250
      %v262 = vadd.f32 %v223, %v250
      %v263 = vadd.f32 %v224, %v250
      %v264 = vadd.f32 %v225, %v250
      %v265 = vadd.f32 %v226, %v250
      %v266 = vadd.f32 %v227, %v250
      %v267 = vadd.f32 %v228, %v250
      %v268 = vadd.f32 %v229, %v250
      %v269 = vadd.f32 %v230, %v250
      %v270 = vadd.f32 %v231, %v250
      %v271 = vadd.f32 %v232, %v250
      %v272 = vadd.f32 %v233, %v250
      %v273 = vadd.f32 %v234, %v250
      %v274 = vadd.f32 %v235, %v250
      %v275 = vadd.f32 %v236, %v250
      %v276 = vadd.f32 %v237, %v250
      %v277 = vadd.f32 %v238, %v250
      %v278 = vadd.f32 %v239, %v250
      %v279 = vadd.f32 %v240, %v250
      %v280 = vadd.f32 %v241, %v250
      %v281 = vadd.f32 %v242, %v250
      %v282 = vadd.f32 %v243, %v250
      %v283 = vadd.f32 %v244, %v250
      %v284 = vmax.f32 %v252, 0.0
      %v285 = vmax.f32 %v253, 0.0
      %v286 = vmax.f32 %v254, 0.0
      %v287 = vmax.f32 %v255, 0.0
      %v288 = vmax.f32 %v256, 0.0
      %v289 = vmax.f32 %v257, 0.0
      %v290 = vmax.f32 %v258, 0.0
      %v291 = vmax.f32 %v259, 0.0
      %v292 = vmax.f32 %v260, 0.0
      %v293 = vmax.f32 %v261, 0.0
      %v294 = vmax.f32 %v262, 0.0
      %v295 = vmax.f32 %v263, 0.0
      %v296 = vmax.f32 %v264, 0.0
      %v297 = vmax.f32 %v265, 0.0
      %v298 = vmax.f32 %v266, 0.0
      %v299 = vmax.f32 %v267, 0.0
      %v300 = vmax.f32 %v268, 0.0
      %v301 = vmax.f32 %v269, 0.0
      %v302 = vmax.f32 %v270, 0.0
      %v303 = vmax.f32 %v271, 0.0
      %v304 = vmax.f32 %v272, 0.0
      %v305 = vmax.f32 %v273, 0.0
      %v306 = vmax.f32 %v274, 0.0
      %v307 = vmax.f32 %v275, 0.0
      %v308 = vmax.f32 %v276, 0.0
      %v309 = vmax.f32 %v277, 0.0
      %v310 = vmax.f32 %v278, 0.0
      %v311 = vmax.f32 %v279, 0.0
      %v312 = vmax.f32 %v280, 0.0
      %v313 = vmax.f32 %v281, 0.0
      %v314 = vmax.f32 %v282, 0.0
      %v315 = vmax.f32 %v283, 0.0
      %vm316 = vcmask 31744
      %317 = vst.msk [vmem:[%s172] sm:$0xff] %vm316, %v284
      %318 = vst.msk [vmem:[%s172 + $0x8] sm:$0xff] %vm316, %v285
      %319 = vst.msk [vmem:[%s172 + $0x10] sm:$0xff] %vm316, %v286
      %320 = vst.msk [vmem:[%s172 + $0x18] sm:$0xff] %vm316, %v287
      %321 = vst.msk [vmem:[%s172 + $0x20] sm:$0xff] %vm316, %v288
      %322 = vst.msk [vmem:[%s172 + $0x28] sm:$0xff] %vm316, %v289
      %323 = vst.msk [vmem:[%s172 + $0x30] sm:$0xff] %vm316, %v290
      %324 = vst.msk [vmem:[%s172 + $0x38] sm:$0xff] %vm316, %v291
      %325 = vst.msk [vmem:[%s172 + $0x40] sm:$0xff] %vm316, %v292
      %326 = vst.msk [vmem:[%s172 + $0x48] sm:$0xff] %vm316, %v293
      %327 = vst.msk [vmem:[%s172 + $0x50] sm:$0xff] %vm316, %v294
      %328 = vst.msk [vmem:[%s172 + $0x58] sm:$0xff] %vm316, %v295
      %329 = vst.msk [vmem:[%s172 + $0x60] sm:$0xff] %vm316, %v296
      %330 = vst.msk [vmem:[%s172 + $0x68] sm:$0xff] %vm316, %v297
      %331 = vst.msk [vmem:[%s172 + $0x70] sm:$0xff] %vm316, %v298
      %332 = vst.msk [vmem:[%s172 + $0x78] sm:$0xff] %vm316, %v299
      %333 = vst.msk [vmem:[%s172 + $0x80] sm:$0xff] %vm316, %v300
      %334 = vst.msk [vmem:[%s172 + $0x88] sm:$0xff] %vm316, %v301
      %335 = vst.msk [vmem:[%s172 + $0x90] sm:$0xff] %vm316, %v302
      %336 = vst.msk [vmem:[%s172 + $0x98] sm:$0xff] %vm316, %v303
      %337 = vst.msk [vmem:[%s172 + $0xa0] sm:$0xff] %vm316, %v304
      %338 = vst.msk [vmem:[%s172 + $0xa8] sm:$0xff] %vm316, %v305
      %339 = vst.msk [vmem:[%s172 + $0xb0] sm:$0xff] %vm316, %v306
      %340 = vst.msk [vmem:[%s172 + $0xb8] sm:$0xff] %vm316, %v307
      %341 = vst.msk [vmem:[%s172 + $0xc0] sm:$0xff] %vm316, %v308
      %342 = vst.msk [vmem:[%s172 + $0xc8] sm:$0xff] %vm316, %v309
      %343 = vst.msk [vmem:[%s172 + $0xd0] sm:$0xff] %vm316, %v310
      %344 = vst.msk [vmem:[%s172 + $0xd8] sm:$0xff] %vm316, %v311
      %345 = vst.msk [vmem:[%s172 + $0xe0] sm:$0xff] %vm316, %v312
      %346 = vst.msk [vmem:[%s172 + $0xe8] sm:$0xff] %vm316, %v313
      %347 = vst.msk [vmem:[%s172 + $0xf0] sm:$0xff] %vm316, %v314
      %348 = vst.msk [vmem:[%s172 + $0xf8] sm:$0xff] %vm316, %v315
      %s349 = smul.u32 32, %s14
      %p350 = scmp.lt.s32.totalorder %s349, 63
      %s351 = scalar_select %p350, %s349, 63
      %s352 = smul.addr %s351, 8
      %s353 = scalar_lea.vmem %s3, %s352
      // Predicated region
      $region33: #{preact_basic_block.8} parent=31 // pred_check
        %p354 = pneg %p100
      $region34: #{preact_basic_block.8} parent=31 // pred_check_branch
        %356 = sbr.rel (%p354) target = $region36
      $region35: #{preact_basic_block.8} parent=31 // pred_region
        %s357 = smul.u32 32, %s14
      $region36: #{preact_basic_block.8} parent=31 // pred_fallthru
        _
    $region32: #{preact_basic_block.8} parent=5 // pred_fallthru
      _
    %p358 = scmp.le.s32.totalorder 2, %s9
    // Predicated region
    $region37: #{preact_basic_block.8} parent=5 // pred_check
      %p359 = pneg %p358
    $region38: #{preact_basic_block.8} parent=5 // pred_check_branch
      %361 = sbr.rel (%p359) target = $region40
    $region39: #{preact_basic_block.8} parent=5 // pred_region
      %s362 = ssub.s32 %s9, 2
      // Predicated region
      $region41: #{preact_basic_block.8} parent=39 // pred_check
        %p363 = pneg %p106
      $region42: #{preact_basic_block.8} parent=39 // pred_check_branch
        %365 = sbr.rel (%p363) target = $region44
      $region43: #{preact_basic_block.8} parent=39 // pred_region
        %s366 = smul.u32 32, %s15
        %p367 = scmp.lt.s32.totalorder %s366, 63
        %s368 = scalar_select %p367, %s366, 63
        %s369 = smul.addr %s368, 8
        %s370 = scalar_lea.vmem %s3, %s369
      $region44: #{preact_basic_block.8} parent=39 // pred_fallthru
        _
    $region40: #{preact_basic_block.8} parent=5 // pred_fallthru
      _
  $region6: #{preact_basic_block.8} parent=0 // loop_footer
    %s13 = sadd.s32 1, %s9
  $region7: #{preact_basic_block.8} parent=0 // loop_footer_branch
    %8 = sbr.rel target = $region3
  $region8: #{preact_basic_block.8} parent=0 // loop_exit
    _

// kernel: preact_basic_block.7
$region0: #{preact_basic_block.7}
  #allocation0 [shape = 'u32[]', space=smem, size = 0x4, offset = 0x4, fixed_abs, tag = 'smem constant byte address 0x4 - core index']
  #allocation1 [shape = 'u32[144,128]{1,0:T(1,128)}', space=vmem, size = 0x12000, scoped, tag = 'internal scratch']
  %s0 = inlined_call_operand.vmem [shape: f32[512,4], index: 0, kind: input, shape index: {}]
  %s1 = inlined_call_operand.vmem [shape: f32[1,4], index: 1, kind: output, shape index: {0}]
  %s2 = inlined_call_operand.vmem [shape: f32[1,4], index: 2, kind: output, shape index: {1}]
  %3 = xla_tuple %s1, %s2
  %s4 = sld [smem:[#allocation0]]
  $region49: #{preact_basic_block.7} parent=0
    _
  %s6 = ssub.s32 1, %s4
  %s7 = scalar_select 0, %s6, %s4
  loop: start=0, step=1, limit=4
  $region2: #{preact_basic_block.7} parent=0 // loop_pre_header
    _
  $region3: #{preact_basic_block.7} parent=0 // loop_header
    %s9 = sphi 0, %s13
    %p10 = scmp.ge.s32.totalorder %s9, 4
    %s19 = sphi 0, %s21
    %s22 = sphi 0, %s19
    %s23 = sphi 0, %s22
    %s39 = sphi 0, %s23
    %s43 = sphi 0, %s43
    %s45 = sphi 0, %s43
    %s46 = sphi 0, %s45
    %s60 = sphi 0, %s46
    %s64 = sphi 0, %s64
    %s66 = sphi 0, %s64
    %s67 = sphi 0, %s66
    %s81 = sphi 0, %s67
  $region4: #{preact_basic_block.7} parent=0 // loop_header_branch
    %12 = sbr.rel (%p10) target = $region8
  $region5: #{preact_basic_block.7} parent=0 // loop_body
    %s14 = ssub.s32 %s9, 1
    %s15 = ssub.s32 %s9, 2
    %s16 = sadd.s32 %s9, 1
    %s17 = ssub.s32 %s9, %s16
    %p18 = scmp.eq.s32.totalorder %s17, 0
    %s20 = sadd.s32 %s19, 1
    %s21 = scalar_select %p18, %s19, %s20
    %p24 = pneg %p18
    %p25 = scmp.eq.s32.totalorder %s9, 1
    %p26 = por %p24, %p25
    %p27 = scmp.ne.s32.totalorder %s19, %s22
    %p28 = scmp.eq.s32.totalorder %s9, 0
    %p29 = por %p27, %p28
    %p30 = scmp.ne.s32.totalorder %s19, %s22
    %p31 = scmp.eq.s32.totalorder %s14, 1
    %p32 = por %p30, %p31
    %p33 = scmp.ne.s32.totalorder %s22, %s23
    %p34 = scmp.eq.s32.totalorder %s14, 0
    %p35 = por %p33, %p34
    %p36 = scmp.ne.s32.totalorder %s22, %s23
    %p37 = scmp.eq.s32.totalorder %s15, 1
    %p38 = por %p36, %p37
    %p40 = scmp.ne.s32.totalorder %s23, %s39
    %p41 = scmp.eq.s32.totalorder %s15, 0
    %p42 = por %p40, %p41
    %s44 = sadd.s32 %s43, 1
    %p47 = scmp.eq.s32.totalorder %s9, 1
    %p48 = scmp.ne.s32.totalorder %s43, %s45
    %p49 = scmp.eq.s32.totalorder %s9, 0
    %p50 = por %p48, %p49
    %p51 = scmp.ne.s32.totalorder %s43, %s45
    %p52 = scmp.eq.s32.totalorder %s14, 1
    %p53 = por %p51, %p52
    %p54 = scmp.ne.s32.totalorder %s45, %s46
    %p55 = scmp.eq.s32.totalorder %s14, 0
    %p56 = por %p54, %p55
    %p57 = scmp.ne.s32.totalorder %s45, %s46
    %p58 = scmp.eq.s32.totalorder %s15, 1
    %p59 = por %p57, %p58
    %p61 = scmp.ne.s32.totalorder %s46, %s60
    %p62 = scmp.eq.s32.totalorder %s15, 0
    %p63 = por %p61, %p62
    %s65 = sadd.s32 %s64, 1
    %p68 = scmp.eq.s32.totalorder %s9, 1
    %p69 = scmp.ne.s32.totalorder %s64, %s66
    %p70 = scmp.eq.s32.totalorder %s9, 0
    %p71 = por %p69, %p70
    %p72 = scmp.ne.s32.totalorder %s64, %s66
    %p73 = scmp.eq.s32.totalorder %s14, 1
    %p74 = por %p72, %p73
    %p75 = scmp.ne.s32.totalorder %s66, %s67
    %p76 = scmp.eq.s32.totalorder %s14, 0
    %p77 = por %p75, %p76
    %p78 = scmp.ne.s32.totalorder %s66, %s67
    %p79 = scmp.eq.s32.totalorder %s15, 1
    %p80 = por %p78, %p79
    %p82 = scmp.ne.s32.totalorder %s67, %s81
    %p83 = scmp.eq.s32.totalorder %s15, 0
    %p84 = por %p82, %p83
    %p85 = scmp.le.s32.totalorder 1, %s9
    %p86 = scmp.lt.s32.totalorder %s9, 3
    %p87 = pnand %p85, %p86
    %p88 = pneg %p87
    // Predicated region
    $region9: #{preact_basic_block.7} parent=5 // pred_check
      _
    $region10: #{preact_basic_block.7} parent=5 // pred_check_branch
      %90 = sbr.rel (%p87) target = $region12
    $region11: #{preact_basic_block.7} parent=5 // pred_region
      %s91 = ssub.s32 %s9, 1
    $region12: #{preact_basic_block.7} parent=5 // pred_fallthru
      _
    %p92 = scmp.lt.s32.totalorder %s9, 2
    // Predicated region
    $region13: #{preact_basic_block.7} parent=5 // pred_check
      %p93 = pneg %p92
    $region14: #{preact_basic_block.7} parent=5 // pred_check_branch
      %95 = sbr.rel (%p93) target = $region16
    $region15: #{preact_basic_block.7} parent=5 // pred_region
      // Predicated region
      $region17: #{preact_basic_block.7} parent=15 // pred_check
        %p96 = pneg %p29
      $region18: #{preact_basic_block.7} parent=15 // pred_check_branch
        %98 = sbr.rel (%p96) target = $region20
      $region19: #{preact_basic_block.7} parent=15 // pred_region
        %s99 = smul.u32 32, %s9
        %p100 = scmp.lt.s32.totalorder %s99, 63
        %s101 = scalar_select %p100, %s99, 63
        %s102 = smul.addr %s101, 8
        %s103 = scalar_lea.vmem %s0, %s102
        %s104 = smul.u32 32, %s9
      $region20: #{preact_basic_block.7} parent=15 // pred_fallthru
        _
    $region16: #{preact_basic_block.7} parent=5 // pred_fallthru
      _
    %p105 = scmp.le.s32.totalorder 1, %s9
    %p106 = scmp.lt.s32.totalorder %s9, 3
    %p107 = pnand %p105, %p106
    %p108 = pneg %p107
    // Predicated region
    $region21: #{preact_basic_block.7} parent=5 // pred_check
      _
    $region22: #{preact_basic_block.7} parent=5 // pred_check_branch
      %110 = sbr.rel (%p107) target = $region24
    $region23: #{preact_basic_block.7} parent=5 // pred_region
      %s111 = ssub.s32 %s9, 1
      %s112 = smul.u32 32, %s14
      %p113 = scmp.lt.s32.totalorder %s112, 63
      %s114 = scalar_select %p113, %s112, 63
      %s115 = smul.addr %s114, 8
      %s116 = scalar_lea.vmem %s0, %s115
      %p117 = pneg %p35
      %p118 = pneg %p32
      %p119 = pneg %p56
      %p120 = pneg %p53
      %p121 = pneg %p77
      %p122 = pneg %p74
      %s123 = smul.u32 32, %s14
      %p124 = scmp.lt.s32.totalorder %s123, 63
      %s125 = scalar_select %p124, %s123, 63
      %s126 = smul.addr %s125, 8
      %s127 = scalar_lea.vmem %s0, %s126
      %s128 = smul.u32 32, %s14
      %p129 = scmp.eq.s32.totalorder %s14, 0
      // Predicated region
      $region25: #{preact_basic_block.7} parent=23 // pred_check
        %p130 = pneg %p129
      $region26: #{preact_basic_block.7} parent=23 // pred_check_branch
        %132 = sbr.rel (%p130) target = $region28
      $region27: #{preact_basic_block.7} parent=23 // pred_region
        %vm133 = vcmask 24576
        %134 = vst.msk [vmem:[%s1] sm:$0x1] %vm133, 0.0
        %135 = vst.msk [vmem:[%s2] sm:$0x1] %vm133, 0.0
      $region28: #{preact_basic_block.7} parent=23 // pred_fallthru
        _
      %v136 = vld [vmem:[%s127] sm:$0xff]
      %v137 = vld [vmem:[%s127 + $0x8] sm:$0xff]
      %v138 = vld [vmem:[%s127 + $0x10] sm:$0xff]
      %v139 = vld [vmem:[%s127 + $0x18] sm:$0xff]
      %v140 = vld [vmem:[%s127 + $0x20] sm:$0xff]
      %v141 = vld [vmem:[%s127 + $0x28] sm:$0xff]
      %v142 = vld [vmem:[%s127 + $0x30] sm:$0xff]
      %v143 = vld [vmem:[%s127 + $0x38] sm:$0xff]
      %v144 = vld [vmem:[%s127 + $0x40] sm:$0xff]
      %v145 = vld [vmem:[%s127 + $0x48] sm:$0xff]
      %v146 = vld [vmem:[%s127 + $0x50] sm:$0xff]
      %v147 = vld [vmem:[%s127 + $0x58] sm:$0xff]
      %v148 = vld [vmem:[%s127 + $0x60] sm:$0xff]
      %v149 = vld [vmem:[%s127 + $0x68] sm:$0xff]
      %v150 = vld [vmem:[%s127 + $0x70] sm:$0xff]
      %v151 = vld [vmem:[%s127 + $0x78] sm:$0xff]
      %v152 = vld [vmem:[%s127 + $0x80] sm:$0xff]
      %v153 = vld [vmem:[%s127 + $0x88] sm:$0xff]
      %v154 = vld [vmem:[%s127 + $0x90] sm:$0xff]
      %v155 = vld [vmem:[%s127 + $0x98] sm:$0xff]
      %v156 = vld [vmem:[%s127 + $0xa0] sm:$0xff]
      %v157 = vld [vmem:[%s127 + $0xa8] sm:$0xff]
      %v158 = vld [vmem:[%s127 + $0xb0] sm:$0xff]
      %v159 = vld [vmem:[%s127 + $0xb8] sm:$0xff]
      %v160 = vld [vmem:[%s127 + $0xc0] sm:$0xff]
      %v161 = vld [vmem:[%s127 + $0xc8] sm:$0xff]
      %v162 = vld [vmem:[%s127 + $0xd0] sm:$0xff]
      %v163 = vld [vmem:[%s127 + $0xd8] sm:$0xff]
      %v164 = vld [vmem:[%s127 + $0xe0] sm:$0xff]
      %v165 = vld [vmem:[%s127 + $0xe8] sm:$0xff]
      %v166 = vld [vmem:[%s127 + $0xf0] sm:$0xff]
      %v167 = vld [vmem:[%s127 + $0xf8] sm:$0xff]
      %v168 = vld [vmem:[%s1] sm:$0x1]
      %vm169 = vcmask 31744
      %v170 = vsel %vm169, %v136, 0.0
      %v171 = vsel %vm169, %v137, 0.0
      %v172 = vadd.f32 %v170, %v171
      %v173 = vsel %vm169, %v138, 0.0
      %v174 = vadd.f32 %v172, %v173
      %v175 = vsel %vm169, %v139, 0.0
      %v176 = vadd.f32 %v174, %v175
      %v177 = vsel %vm169, %v140, 0.0
      %v178 = vadd.f32 %v176, %v177
      %v179 = vsel %vm169, %v141, 0.0
      %v180 = vadd.f32 %v178, %v179
      %v181 = vsel %vm169, %v142, 0.0
      %v182 = vadd.f32 %v180, %v181
      %v183 = vsel %vm169, %v143, 0.0
      %v184 = vadd.f32 %v182, %v183
      %v185 = vsel %vm169, %v144, 0.0
      %v186 = vadd.f32 %v184, %v185
      %v187 = vsel %vm169, %v145, 0.0
      %v188 = vadd.f32 %v186, %v187
      %v189 = vsel %vm169, %v146, 0.0
      %v190 = vadd.f32 %v188, %v189
      %v191 = vsel %vm169, %v147, 0.0
      %v192 = vadd.f32 %v190, %v191
      %v193 = vsel %vm169, %v148, 0.0
      %v194 = vadd.f32 %v192, %v193
      %v195 = vsel %vm169, %v149, 0.0
      %v196 = vadd.f32 %v194, %v195
      %v197 = vsel %vm169, %v150, 0.0
      %v198 = vadd.f32 %v196, %v197
      %v199 = vsel %vm169, %v151, 0.0
      %v200 = vadd.f32 %v198, %v199
      %v201 = vsel %vm169, %v152, 0.0
      %v202 = vadd.f32 %v200, %v201
      %v203 = vsel %vm169, %v153, 0.0
      %v204 = vadd.f32 %v202, %v203
      %v205 = vsel %vm169, %v154, 0.0
      %v206 = vadd.f32 %v204, %v205
      %v207 = vsel %vm169, %v155, 0.0
      %v208 = vadd.f32 %v206, %v207
      %v209 = vsel %vm169, %v156, 0.0
      %v210 = vadd.f32 %v208, %v209
      %v211 = vsel %vm169, %v157, 0.0
      %v212 = vadd.f32 %v210, %v211
      %v213 = vsel %vm169, %v158, 0.0
      %v214 = vadd.f32 %v212, %v213
      %v215 = vsel %vm169, %v159, 0.0
      %v216 = vadd.f32 %v214, %v215
      %v217 = vsel %vm169, %v160, 0.0
      %v218 = vadd.f32 %v216, %v217
      %v219 = vsel %vm169, %v161, 0.0
      %v220 = vadd.f32 %v218, %v219
      %v221 = vsel %vm169, %v162, 0.0
      %v222 = vadd.f32 %v220, %v221
      %v223 = vsel %vm169, %v163, 0.0
      %v224 = vadd.f32 %v222, %v223
      %v225 = vsel %vm169, %v164, 0.0
      %v226 = vadd.f32 %v224, %v225
      %v227 = vsel %vm169, %v165, 0.0
      %v228 = vadd.f32 %v226, %v227
      %v229 = vsel %vm169, %v166, 0.0
      %v230 = vadd.f32 %v228, %v229
      %v231 = vsel %vm169, %v167, 0.0
      %v232 = vadd.f32 %v230, %v231
      %v233 = vrot.slane %v232, 4
      %v234 = vadd.f32 %v232, %v233
      %v235 = vrot.slane %v234, 2
      %v236 = vadd.f32 %v234, %v235
      %v237 = vrot.slane %v236, 1
      %v238 = vadd.f32 %v236, %v237
      %v239 = vadd.f32 %v168, %v238
      %vm240 = vcmask 24576
      %241 = vst.msk [vmem:[%s1] sm:$0x1] %vm240, %v239
      %v242 = vld [vmem:[%s2] sm:$0x1]
      %v243 = vmul.f32 %v136, %v136
      %v244 = vmul.f32 %v137, %v137
      %v245 = vmul.f32 %v138, %v138
      %v246 = vmul.f32 %v139, %v139
      %v247 = vmul.f32 %v140, %v140
      %v248 = vmul.f32 %v141, %v141
      %v249 = vmul.f32 %v142, %v142
      %v250 = vmul.f32 %v143, %v143
      %v251 = vmul.f32 %v144, %v144
      %v252 = vmul.f32 %v145, %v145
      %v253 = vmul.f32 %v146, %v146
      %v254 = vmul.f32 %v147, %v147
      %v255 = vmul.f32 %v148, %v148
      %v256 = vmul.f32 %v149, %v149
      %v257 = vmul.f32 %v150, %v150
      %v258 = vmul.f32 %v151, %v151
      %v259 = vmul.f32 %v152, %v152
      %v260 = vmul.f32 %v153, %v153
      %v261 = vmul.f32 %v154, %v154
      %v262 = vmul.f32 %v155, %v155
      %v263 = vmul.f32 %v156, %v156
      %v264 = vmul.f32 %v157, %v157
      %v265 = vmul.f32 %v158, %v158
      %v266 = vmul.f32 %v159, %v159
      %v267 = vmul.f32 %v160, %v160
      %v268 = vmul.f32 %v161, %v161
      %v269 = vmul.f32 %v162, %v162
      %v270 = vmul.f32 %v163, %v163
      %v271 = vmul.f32 %v164, %v164
      %v272 = vmul.f32 %v165, %v165
      %v273 = vmul.f32 %v166, %v166
      %v274 = vmul.f32 %v167, %v167
      %v275 = vsel %vm169, %v243, 0.0
      %v276 = vsel %vm169, %v244, 0.0
      %v277 = vadd.f32 %v275, %v276
      %v278 = vsel %vm169, %v245, 0.0
      %v279 = vadd.f32 %v277, %v278
      %v280 = vsel %vm169, %v246, 0.0
      %v281 = vadd.f32 %v279, %v280
      %v282 = vsel %vm169, %v247, 0.0
      %v283 = vadd.f32 %v281, %v282
      %v284 = vsel %vm169, %v248, 0.0
      %v285 = vadd.f32 %v283, %v284
      %v286 = vsel %vm169, %v249, 0.0
      %v287 = vadd.f32 %v285, %v286
      %v288 = vsel %vm169, %v250, 0.0
      %v289 = vadd.f32 %v287, %v288
      %v290 = vsel %vm169, %v251, 0.0
      %v291 = vadd.f32 %v289, %v290
      %v292 = vsel %vm169, %v252, 0.0
      %v293 = vadd.f32 %v291, %v292
      %v294 = vsel %vm169, %v253, 0.0
      %v295 = vadd.f32 %v293, %v294
      %v296 = vsel %vm169, %v254, 0.0
      %v297 = vadd.f32 %v295, %v296
      %v298 = vsel %vm169, %v255, 0.0
      %v299 = vadd.f32 %v297, %v298
      %v300 = vsel %vm169, %v256, 0.0
      %v301 = vadd.f32 %v299, %v300
      %v302 = vsel %vm169, %v257, 0.0
      %v303 = vadd.f32 %v301, %v302
      %v304 = vsel %vm169, %v258, 0.0
      %v305 = vadd.f32 %v303, %v304
      %v306 = vsel %vm169, %v259, 0.0
      %v307 = vadd.f32 %v305, %v306
      %v308 = vsel %vm169, %v260, 0.0
      %v309 = vadd.f32 %v307, %v308
      %v310 = vsel %vm169, %v261, 0.0
      %v311 = vadd.f32 %v309, %v310
      %v312 = vsel %vm169, %v262, 0.0
      %v313 = vadd.f32 %v311, %v312
      %v314 = vsel %vm169, %v263, 0.0
      %v315 = vadd.f32 %v313, %v314
      %v316 = vsel %vm169, %v264, 0.0
      %v317 = vadd.f32 %v315, %v316
      %v318 = vsel %vm169, %v265, 0.0
      %v319 = vadd.f32 %v317, %v318
      %v320 = vsel %vm169, %v266, 0.0
      %v321 = vadd.f32 %v319, %v320
      %v322 = vsel %vm169, %v267, 0.0
      %v323 = vadd.f32 %v321, %v322
      %v324 = vsel %vm169, %v268, 0.0
      %v325 = vadd.f32 %v323, %v324
      %v326 = vsel %vm169, %v269, 0.0
      %v327 = vadd.f32 %v325, %v326
      %v328 = vsel %vm169, %v270, 0.0
      %v329 = vadd.f32 %v327, %v328
      %v330 = vsel %vm169, %v271, 0.0
      %v331 = vadd.f32 %v329, %v330
      %v332 = vsel %vm169, %v272, 0.0
      %v333 = vadd.f32 %v331, %v332
      %v334 = vsel %vm169, %v273, 0.0
      %v335 = vadd.f32 %v333, %v334
      %v336 = vsel %vm169, %v274, 0.0
      %v337 = vadd.f32 %v335, %v336
      %v338 = vrot.slane %v337, 4
      %v339 = vadd.f32 %v337, %v338
      %v340 = vrot.slane %v339, 2
      %v341 = vadd.f32 %v339, %v340
      %v342 = vrot.slane %v341, 1
      %v343 = vadd.f32 %v341, %v342
      %v344 = vadd.f32 %v242, %v343
      %345 = vst.msk [vmem:[%s2] sm:$0x1] %vm240, %v344
      // Predicated region
      $region29: #{preact_basic_block.7} parent=23 // pred_check
        %p346 = pneg %p53
      $region30: #{preact_basic_block.7} parent=23 // pred_check_branch
        %348 = sbr.rel (%p346) target = $region32
      $region31: #{preact_basic_block.7} parent=23 // pred_region
        _
      $region32: #{preact_basic_block.7} parent=23 // pred_fallthru
        _
      // Predicated region
      $region33: #{preact_basic_block.7} parent=23 // pred_check
        %p349 = pneg %p74
      $region34: #{preact_basic_block.7} parent=23 // pred_check_branch
        %351 = sbr.rel (%p349) target = $region36
      $region35: #{preact_basic_block.7} parent=23 // pred_region
        _
      $region36: #{preact_basic_block.7} parent=23 // pred_fallthru
        _
      // Predicated region
      $region37: #{preact_basic_block.7} parent=23 // pred_check
        %p352 = pneg %p53
      $region38: #{preact_basic_block.7} parent=23 // pred_check_branch
        %354 = sbr.rel (%p352) target = $region40
      $region39: #{preact_basic_block.7} parent=23 // pred_region
        _
      $region40: #{preact_basic_block.7} parent=23 // pred_fallthru
        _
      // Predicated region
      $region41: #{preact_basic_block.7} parent=23 // pred_check
        %p355 = pneg %p74
      $region42: #{preact_basic_block.7} parent=23 // pred_check_branch
        %357 = sbr.rel (%p355) target = $region44
      $region43: #{preact_basic_block.7} parent=23 // pred_region
        _
      $region44: #{preact_basic_block.7} parent=23 // pred_fallthru
        _
    $region24: #{preact_basic_block.7} parent=5 // pred_fallthru
      _
    %p358 = scmp.le.s32.totalorder 2, %s9
    // Predicated region
    $region45: #{preact_basic_block.7} parent=5 // pred_check
      %p359 = pneg %p358
    $region46: #{preact_basic_block.7} parent=5 // pred_check_branch
      %361 = sbr.rel (%p359) target = $region48
    $region47: #{preact_basic_block.7} parent=5 // pred_region
      %s362 = ssub.s32 %s9, 2
    $region48: #{preact_basic_block.7} parent=5 // pred_fallthru
      _
  $region6: #{preact_basic_block.7} parent=0 // loop_footer
    %s13 = sadd.s32 1, %s9
  $region7: #{preact_basic_block.7} parent=0 // loop_footer_branch
    %8 = sbr.rel target = $region3
  $region8: #{preact_basic_block.7} parent=0 // loop_exit
    _

// kernel: preact_basic_block.11
$region0: #{preact_basic_block.11}
  #allocation0 [shape = 'u32[]', space=smem, size = 0x4, offset = 0x4, fixed_abs, tag = 'smem constant byte address 0x4 - core index']
  #allocation1 [shape = 'u32[144,128]{1,0:T(1,128)}', space=vmem, size = 0x12000, scoped, tag = 'internal scratch']
  %s0 = inlined_call_operand.vmem [shape: f32[128,8], index: 0, kind: input, shape index: {}]
  %s1 = inlined_call_operand.vmem [shape: f32[1,8], index: 1, kind: input, shape index: {}]
  %s2 = inlined_call_operand.vmem [shape: f32[1,8], index: 2, kind: input, shape index: {}]
  %s3 = inlined_call_operand.vmem [shape: f32[128,8], index: 3, kind: output, shape index: {}]
  %s4 = sld [smem:[#allocation0]]
  $region22: #{preact_basic_block.11} parent=0
    _
  %s6 = ssub.s32 1, %s4
  %s7 = scalar_select 0, %s6, %s4
  // Predicated region
  $region2: #{preact_basic_block.11} parent=0 // pred_check
    _
  $region3: #{preact_basic_block.11} parent=0 // pred_check_branch
    %9 = sbr.rel (0) target = $region5
  $region4: #{preact_basic_block.11} parent=0 // pred_region
    _
  $region5: #{preact_basic_block.11} parent=0 // pred_fallthru
    _
  // Predicated region
  $region6: #{preact_basic_block.11} parent=0 // pred_check
    _
  $region7: #{preact_basic_block.11} parent=0 // pred_check_branch
    %11 = sbr.rel (0) target = $region9
  $region8: #{preact_basic_block.11} parent=0 // pred_region
    _
  $region9: #{preact_basic_block.11} parent=0 // pred_fallthru
    _
  // Predicated region
  $region10: #{preact_basic_block.11} parent=0 // pred_check
    _
  $region11: #{preact_basic_block.11} parent=0 // pred_check_branch
    %13 = sbr.rel (0) target = $region13
  $region12: #{preact_basic_block.11} parent=0 // pred_region
    _
  $region13: #{preact_basic_block.11} parent=0 // pred_fallthru
    _
  %v14 = vld [vmem:[%s0] sm:$0xff]
  %v15 = vld [vmem:[%s0 + $0x8] sm:$0xff]
  %v16 = vld [vmem:[%s0 + $0x10] sm:$0xff]
  %v17 = vld [vmem:[%s0 + $0x18] sm:$0xff]
  %v18 = vld [vmem:[%s0 + $0x20] sm:$0xff]
  %v19 = vld [vmem:[%s0 + $0x28] sm:$0xff]
  %v20 = vld [vmem:[%s0 + $0x30] sm:$0xff]
  %v21 = vld [vmem:[%s0 + $0x38] sm:$0xff]
  %v22 = vld [vmem:[%s0 + $0x40] sm:$0xff]
  %v23 = vld [vmem:[%s0 + $0x48] sm:$0xff]
  %v24 = vld [vmem:[%s0 + $0x50] sm:$0xff]
  %v25 = vld [vmem:[%s0 + $0x58] sm:$0xff]
  %v26 = vld [vmem:[%s0 + $0x60] sm:$0xff]
  %v27 = vld [vmem:[%s0 + $0x68] sm:$0xff]
  %v28 = vld [vmem:[%s0 + $0x70] sm:$0xff]
  %v29 = vld [vmem:[%s0 + $0x78] sm:$0xff]
  %v30 = vld [vmem:[%s1] sm:$0x1]
  %v32 = vlaneseq
  %v33 = vshrl.u32 %v32, 7
  %v34 = vsub.s32 0, %v33
  %v35 = vrot.slane %v30, %v34
  %v37 = vmul.f32 %v14, %v35
  %v38 = vmul.f32 %v15, %v35
  %v39 = vmul.f32 %v16, %v35
  %v40 = vmul.f32 %v17, %v35
  %v41 = vmul.f32 %v18, %v35
  %v42 = vmul.f32 %v19, %v35
  %v43 = vmul.f32 %v20, %v35
  %v44 = vmul.f32 %v21, %v35
  %v45 = vmul.f32 %v22, %v35
  %v46 = vmul.f32 %v23, %v35
  %v47 = vmul.f32 %v24, %v35
  %v48 = vmul.f32 %v25, %v35
  %v49 = vmul.f32 %v26, %v35
  %v50 = vmul.f32 %v27, %v35
  %v51 = vmul.f32 %v28, %v35
  %v52 = vmul.f32 %v29, %v35
  %v53 = vld [vmem:[%s2] sm:$0x1]
  %v55 = vlaneseq
  %v56 = vshrl.u32 %v55, 7
  %v57 = vsub.s32 0, %v56
  %v58 = vrot.slane %v53, %v57
  %v60 = vadd.f32 %v37, %v58
  %v61 = vadd.f32 %v38, %v58
  %v62 = vadd.f32 %v39, %v58
  %v63 = vadd.f32 %v40, %v58
  %v64 = vadd.f32 %v41, %v58
  %v65 = vadd.f32 %v42, %v58
  %v66 = vadd.f32 %v43, %v58
  %v67 = vadd.f32 %v44, %v58
  %v68 = vadd.f32 %v45, %v58
  %v69 = vadd.f32 %v46, %v58
  %v70 = vadd.f32 %v47, %v58
  %v71 = vadd.f32 %v48, %v58
  %v72 = vadd.f32 %v49, %v58
  %v73 = vadd.f32 %v50, %v58
  %v74 = vadd.f32 %v51, %v58
  %v75 = vadd.f32 %v52, %v58
  %v76 = vmax.f32 %v60, 0.0
  %v77 = vmax.f32 %v61, 0.0
  %v78 = vmax.f32 %v62, 0.0
  %v79 = vmax.f32 %v63, 0.0
  %v80 = vmax.f32 %v64, 0.0
  %v81 = vmax.f32 %v65, 0.0
  %v82 = vmax.f32 %v66, 0.0
  %v83 = vmax.f32 %v67, 0.0
  %v84 = vmax.f32 %v68, 0.0
  %v85 = vmax.f32 %v69, 0.0
  %v86 = vmax.f32 %v70, 0.0
  %v87 = vmax.f32 %v71, 0.0
  %v88 = vmax.f32 %v72, 0.0
  %v89 = vmax.f32 %v73, 0.0
  %v90 = vmax.f32 %v74, 0.0
  %v91 = vmax.f32 %v75, 0.0
  %vm92 = vcmask 64512
  %93 = vst.msk [vmem:[%s3] sm:$0xff] %vm92, %v76
  %94 = vst.msk [vmem:[%s3 + $0x8] sm:$0xff] %vm92, %v77
  %95 = vst.msk [vmem:[%s3 + $0x10] sm:$0xff] %vm92, %v78
  %96 = vst.msk [vmem:[%s3 + $0x18] sm:$0xff] %vm92, %v79
  %97 = vst.msk [vmem:[%s3 + $0x20] sm:$0xff] %vm92, %v80
  %98 = vst.msk [vmem:[%s3 + $0x28] sm:$0xff] %vm92, %v81
  %99 = vst.msk [vmem:[%s3 + $0x30] sm:$0xff] %vm92, %v82
  %100 = vst.msk [vmem:[%s3 + $0x38] sm:$0xff] %vm92, %v83
  %101 = vst.msk [vmem:[%s3 + $0x40] sm:$0xff] %vm92, %v84
  %102 = vst.msk [vmem:[%s3 + $0x48] sm:$0xff] %vm92, %v85
  %103 = vst.msk [vmem:[%s3 + $0x50] sm:$0xff] %vm92, %v86
  %104 = vst.msk [vmem:[%s3 + $0x58] sm:$0xff] %vm92, %v87
  %105 = vst.msk [vmem:[%s3 + $0x60] sm:$0xff] %vm92, %v88
  %106 = vst.msk [vmem:[%s3 + $0x68] sm:$0xff] %vm92, %v89
  %107 = vst.msk [vmem:[%s3 + $0x70] sm:$0xff] %vm92, %v90
  %108 = vst.msk [vmem:[%s3 + $0x78] sm:$0xff] %vm92, %v91
  // Predicated region
  $region14: #{preact_basic_block.11} parent=0 // pred_check
    _
  $region15: #{preact_basic_block.11} parent=0 // pred_check_branch
    %110 = sbr.rel (0) target = $region17
  $region16: #{preact_basic_block.11} parent=0 // pred_region
    _
  $region17: #{preact_basic_block.11} parent=0 // pred_fallthru
    _
  // Predicated region
  $region18: #{preact_basic_block.11} parent=0 // pred_check
    _
  $region19: #{preact_basic_block.11} parent=0 // pred_check_branch
    %112 = sbr.rel (0) target = $region21
  $region20: #{preact_basic_block.11} parent=0 // pred_region
    _
  $region21: #{preact_basic_block.11} parent=0 // pred_fallthru
    _

// kernel: preact_basic_block.10
$region0: #{preact_basic_block.10}
  #allocation0 [shape = 'u32[]', space=smem, size = 0x4, offset = 0x4, fixed_abs, tag = 'smem constant byte address 0x4 - core index']
  #allocation1 [shape = 'u32[144,128]{1,0:T(1,128)}', space=vmem, size = 0x12000, scoped, tag = 'internal scratch']
  %s0 = inlined_call_operand.vmem [shape: f32[128,8], index: 0, kind: input, shape index: {}]
  %s1 = inlined_call_operand.vmem [shape: f32[1,8], index: 1, kind: output, shape index: {0}]
  %s2 = inlined_call_operand.vmem [shape: f32[1,8], index: 2, kind: output, shape index: {1}]
  %3 = xla_tuple %s1, %s2
  %s4 = sld [smem:[#allocation0]]
  $region26: #{preact_basic_block.10} parent=0
    _
  %s6 = ssub.s32 1, %s4
  %s7 = scalar_select 0, %s6, %s4
  // Predicated region
  $region2: #{preact_basic_block.10} parent=0 // pred_check
    _
  $region3: #{preact_basic_block.10} parent=0 // pred_check_branch
    %9 = sbr.rel (0) target = $region5
  $region4: #{preact_basic_block.10} parent=0 // pred_region
    _
  $region5: #{preact_basic_block.10} parent=0 // pred_fallthru
    _
  %p10 = scmp.eq.s32.totalorder 0, 0
  // Predicated region
  $region6: #{preact_basic_block.10} parent=0 // pred_check
    %p11 = pneg %p10
  $region7: #{preact_basic_block.10} parent=0 // pred_check_branch
    %13 = sbr.rel (%p11) target = $region9
  $region8: #{preact_basic_block.10} parent=0 // pred_region
    %vm14 = vcmask 57344
    %15 = vst.msk [vmem:[%s1] sm:$0x1] %vm14, 0.0
    %16 = vst.msk [vmem:[%s2] sm:$0x1] %vm14, 0.0
  $region9: #{preact_basic_block.10} parent=0 // pred_fallthru
    _
  %v17 = vld [vmem:[%s0] sm:$0xff]
  %v18 = vld [vmem:[%s0 + $0x8] sm:$0xff]
  %v19 = vld [vmem:[%s0 + $0x10] sm:$0xff]
  %v20 = vld [vmem:[%s0 + $0x18] sm:$0xff]
  %v21 = vld [vmem:[%s0 + $0x20] sm:$0xff]
  %v22 = vld [vmem:[%s0 + $0x28] sm:$0xff]
  %v23 = vld [vmem:[%s0 + $0x30] sm:$0xff]
  %v24 = vld [vmem:[%s0 + $0x38] sm:$0xff]
  %v25 = vld [vmem:[%s0 + $0x40] sm:$0xff]
  %v26 = vld [vmem:[%s0 + $0x48] sm:$0xff]
  %v27 = vld [vmem:[%s0 + $0x50] sm:$0xff]
  %v28 = vld [vmem:[%s0 + $0x58] sm:$0xff]
  %v29 = vld [vmem:[%s0 + $0x60] sm:$0xff]
  %v30 = vld [vmem:[%s0 + $0x68] sm:$0xff]
  %v31 = vld [vmem:[%s0 + $0x70] sm:$0xff]
  %v32 = vld [vmem:[%s0 + $0x78] sm:$0xff]
  %v33 = vld [vmem:[%s1] sm:$0x1]
  %vm34 = vcmask 64512
  %v35 = vsel %vm34, %v17, 0.0
  %v36 = vsel %vm34, %v18, 0.0
  %v37 = vadd.f32 %v35, %v36
  %v38 = vsel %vm34, %v19, 0.0
  %v39 = vadd.f32 %v37, %v38
  %v40 = vsel %vm34, %v20, 0.0
  %v41 = vadd.f32 %v39, %v40
  %v42 = vsel %vm34, %v21, 0.0
  %v43 = vadd.f32 %v41, %v42
  %v44 = vsel %vm34, %v22, 0.0
  %v45 = vadd.f32 %v43, %v44
  %v46 = vsel %vm34, %v23, 0.0
  %v47 = vadd.f32 %v45, %v46
  %v48 = vsel %vm34, %v24, 0.0
  %v49 = vadd.f32 %v47, %v48
  %v50 = vsel %vm34, %v25, 0.0
  %v51 = vadd.f32 %v49, %v50
  %v52 = vsel %vm34, %v26, 0.0
  %v53 = vadd.f32 %v51, %v52
  %v54 = vsel %vm34, %v27, 0.0
  %v55 = vadd.f32 %v53, %v54
  %v56 = vsel %vm34, %v28, 0.0
  %v57 = vadd.f32 %v55, %v56
  %v58 = vsel %vm34, %v29, 0.0
  %v59 = vadd.f32 %v57, %v58
  %v60 = vsel %vm34, %v30, 0.0
  %v61 = vadd.f32 %v59, %v60
  %v62 = vsel %vm34, %v31, 0.0
  %v63 = vadd.f32 %v61, %v62
  %v64 = vsel %vm34, %v32, 0.0
  %v65 = vadd.f32 %v63, %v64
  %v66 = vrot.slane %v65, 4
  %v67 = vadd.f32 %v65, %v66
  %v68 = vrot.slane %v67, 2
  %v69 = vadd.f32 %v67, %v68
  %v70 = vrot.slane %v69, 1
  %v71 = vadd.f32 %v69, %v70
  %v72 = vadd.f32 %v33, %v71
  %vm73 = vcmask 57344
  %74 = vst.msk [vmem:[%s1] sm:$0x1] %vm73, %v72
  %v75 = vld [vmem:[%s2] sm:$0x1]
  %v76 = vmul.f32 %v17, %v17
  %v77 = vmul.f32 %v18, %v18
  %v78 = vmul.f32 %v19, %v19
  %v79 = vmul.f32 %v20, %v20
  %v80 = vmul.f32 %v21, %v21
  %v81 = vmul.f32 %v22, %v22
  %v82 = vmul.f32 %v23, %v23
  %v83 = vmul.f32 %v24, %v24
  %v84 = vmul.f32 %v25, %v25
  %v85 = vmul.f32 %v26, %v26
  %v86 = vmul.f32 %v27, %v27
  %v87 = vmul.f32 %v28, %v28
  %v88 = vmul.f32 %v29, %v29
  %v89 = vmul.f32 %v30, %v30
  %v90 = vmul.f32 %v31, %v31
  %v91 = vmul.f32 %v32, %v32
  %v92 = vsel %vm34, %v76, 0.0
  %v93 = vsel %vm34, %v77, 0.0
  %v94 = vadd.f32 %v92, %v93
  %v95 = vsel %vm34, %v78, 0.0
  %v96 = vadd.f32 %v94, %v95
  %v97 = vsel %vm34, %v79, 0.0
  %v98 = vadd.f32 %v96, %v97
  %v99 = vsel %vm34, %v80, 0.0
  %v100 = vadd.f32 %v98, %v99
  %v101 = vsel %vm34, %v81, 0.0
  %v102 = vadd.f32 %v100, %v101
  %v103 = vsel %vm34, %v82, 0.0
  %v104 = vadd.f32 %v102, %v103
  %v105 = vsel %vm34, %v83, 0.0
  %v106 = vadd.f32 %v104, %v105
  %v107 = vsel %vm34, %v84, 0.0
  %v108 = vadd.f32 %v106, %v107
  %v109 = vsel %vm34, %v85, 0.0
  %v110 = vadd.f32 %v108, %v109
  %v111 = vsel %vm34, %v86, 0.0
  %v112 = vadd.f32 %v110, %v111
  %v113 = vsel %vm34, %v87, 0.0
  %v114 = vadd.f32 %v112, %v113
  %v115 = vsel %vm34, %v88, 0.0
  %v116 = vadd.f32 %v114, %v115
  %v117 = vsel %vm34, %v89, 0.0
  %v118 = vadd.f32 %v116, %v117
  %v119 = vsel %vm34, %v90, 0.0
  %v120 = vadd.f32 %v118, %v119
  %v121 = vsel %vm34, %v91, 0.0
  %v122 = vadd.f32 %v120, %v121
  %v123 = vrot.slane %v122, 4
  %v124 = vadd.f32 %v122, %v123
  %v125 = vrot.slane %v124, 2
  %v126 = vadd.f32 %v124, %v125
  %v127 = vrot.slane %v126, 1
  %v128 = vadd.f32 %v126, %v127
  %v129 = vadd.f32 %v75, %v128
  %130 = vst.msk [vmem:[%s2] sm:$0x1] %vm73, %v129
  // Predicated region
  $region10: #{preact_basic_block.10} parent=0 // pred_check
    _
  $region11: #{preact_basic_block.10} parent=0 // pred_check_branch
    %132 = sbr.rel (0) target = $region13
  $region12: #{preact_basic_block.10} parent=0 // pred_region
    _
  $region13: #{preact_basic_block.10} parent=0 // pred_fallthru
    _
  // Predicated region
  $region14: #{preact_basic_block.10} parent=0 // pred_check
    _
  $region15: #{preact_basic_block.10} parent=0 // pred_check_branch
    %134 = sbr.rel (0) target = $region17
  $region16: #{preact_basic_block.10} parent=0 // pred_region
    _
  $region17: #{preact_basic_block.10} parent=0 // pred_fallthru
    _
  // Predicated region
  $region18: #{preact_basic_block.10} parent=0 // pred_check
    _
  $region19: #{preact_basic_block.10} parent=0 // pred_check_branch
    %136 = sbr.rel (0) target = $region21
  $region20: #{preact_basic_block.10} parent=0 // pred_region
    _
  $region21: #{preact_basic_block.10} parent=0 // pred_fallthru
    _
  // Predicated region
  $region22: #{preact_basic_block.10} parent=0 // pred_check
    _
  $region23: #{preact_basic_block.10} parent=0 // pred_check_branch
    %138 = sbr.rel (0) target = $region25
  $region24: #{preact_basic_block.10} parent=0 // pred_region
    _
  $region25: #{preact_basic_block.10} parent=0 // pred_fallthru
    _

// kernel: preact_basic_block.9
$region0: #{preact_basic_block.9}
  #allocation0 [shape = 'u32[]', space=smem, size = 0x4, offset = 0x4, fixed_abs, tag = 'smem constant byte address 0x4 - core index']
  #allocation1 [shape = 'u32[144,128]{1,0:T(1,128)}', space=vmem, size = 0x12000, scoped, tag = 'internal scratch']
  #allocation2 [shape = 'f32[128,128]{1,0:T(8,128)}', space=vmem, size = 0x10000, scoped, tag = 'scratch operand']
  %s0 = inlined_call_operand.vmem [shape: f32[128,128], index: 0, kind: input, shape index: {}]
  %s1 = inlined_call_operand.vmem [shape: f32[128,128], index: 1, kind: input, shape index: {}]
  %s2 = inlined_call_operand.vmem [shape: f32[128,128], index: 2, kind: output, shape index: {}]
  %s3 = sld [smem:[#allocation0]]
  $region26: #{preact_basic_block.9} parent=0
    _
  %s5 = ssub.s32 1, %s3
  %s6 = scalar_select 0, %s5, %s3
  // Predicated region
  $region2: #{preact_basic_block.9} parent=0 // pred_check
    _
  $region3: #{preact_basic_block.9} parent=0 // pred_check_branch
    %8 = sbr.rel (0) target = $region5
  $region4: #{preact_basic_block.9} parent=0 // pred_region
    _
  $region5: #{preact_basic_block.9} parent=0 // pred_fallthru
    _
  // Predicated region
  $region6: #{preact_basic_block.9} parent=0 // pred_check
    _
  $region7: #{preact_basic_block.9} parent=0 // pred_check_branch
    %10 = sbr.rel (0) target = $region9
  $region8: #{preact_basic_block.9} parent=0 // pred_region
    _
  $region9: #{preact_basic_block.9} parent=0 // pred_fallthru
    _
  %p11 = scmp.eq.s32.totalorder 0, 0
  // Predicated region
  $region10: #{preact_basic_block.9} parent=0 // pred_check
    %p12 = pneg %p11
  $region11: #{preact_basic_block.9} parent=0 // pred_check_branch
    %14 = sbr.rel (%p12) target = $region13
  $region12: #{preact_basic_block.9} parent=0 // pred_region
    %15 = vst [vmem:[#allocation2] sm:$0xff] 0.0
    %16 = vst [vmem:[#allocation2 + $0x8] sm:$0xff] 0.0
    %17 = vst [vmem:[#allocation2 + $0x10] sm:$0xff] 0.0
    %18 = vst [vmem:[#allocation2 + $0x18] sm:$0xff] 0.0
    %19 = vst [vmem:[#allocation2 + $0x20] sm:$0xff] 0.0
    %20 = vst [vmem:[#allocation2 + $0x28] sm:$0xff] 0.0
    %21 = vst [vmem:[#allocation2 + $0x30] sm:$0xff] 0.0
    %22 = vst [vmem:[#allocation2 + $0x38] sm:$0xff] 0.0
    %23 = vst [vmem:[#allocation2 + $0x40] sm:$0xff] 0.0
    %24 = vst [vmem:[#allocation2 + $0x48] sm:$0xff] 0.0
    %25 = vst [vmem:[#allocation2 + $0x50] sm:$0xff] 0.0
    %26 = vst [vmem:[#allocation2 + $0x58] sm:$0xff] 0.0
    %27 = vst [vmem:[#allocation2 + $0x60] sm:$0xff] 0.0
    %28 = vst [vmem:[#allocation2 + $0x68] sm:$0xff] 0.0
    %29 = vst [vmem:[#allocation2 + $0x70] sm:$0xff] 0.0
    %30 = vst [vmem:[#allocation2 + $0x78] sm:$0xff] 0.0
  $region13: #{preact_basic_block.9} parent=0 // pred_fallthru
    _
  %v31 = vld [vmem:[#allocation2] sm:$0xff]
  %v32 = vld [vmem:[#allocation2 + $0x8] sm:$0xff]
  %v33 = vld [vmem:[#allocation2 + $0x10] sm:$0xff]
  %v34 = vld [vmem:[#allocation2 + $0x18] sm:$0xff]
  %v35 = vld [vmem:[#allocation2 + $0x20] sm:$0xff]
  %v36 = vld [vmem:[#allocation2 + $0x28] sm:$0xff]
  %v37 = vld [vmem:[#allocation2 + $0x30] sm:$0xff]
  %v38 = vld [vmem:[#allocation2 + $0x38] sm:$0xff]
  %v39 = vld [vmem:[#allocation2 + $0x40] sm:$0xff]
  %v40 = vld [vmem:[#allocation2 + $0x48] sm:$0xff]
  %v41 = vld [vmem:[#allocation2 + $0x50] sm:$0xff]
  %v42 = vld [vmem:[#allocation2 + $0x58] sm:$0xff]
  %v43 = vld [vmem:[#allocation2 + $0x60] sm:$0xff]
  %v44 = vld [vmem:[#allocation2 + $0x68] sm:$0xff]
  %v45 = vld [vmem:[#allocation2 + $0x70] sm:$0xff]
  %v46 = vld [vmem:[#allocation2 + $0x78] sm:$0xff]
  %v47 = vld [vmem:[%s0] sm:$0xff]
  %v48 = vld [vmem:[%s0 + $0x8] sm:$0xff]
  %v49 = vld [vmem:[%s0 + $0x10] sm:$0xff]
  %v50 = vld [vmem:[%s0 + $0x18] sm:$0xff]
  %v51 = vld [vmem:[%s0 + $0x20] sm:$0xff]
  %v52 = vld [vmem:[%s0 + $0x28] sm:$0xff]
  %v53 = vld [vmem:[%s0 + $0x30] sm:$0xff]
  %v54 = vld [vmem:[%s0 + $0x38] sm:$0xff]
  %v55 = vld [vmem:[%s0 + $0x40] sm:$0xff]
  %v56 = vld [vmem:[%s0 + $0x48] sm:$0xff]
  %v57 = vld [vmem:[%s0 + $0x50] sm:$0xff]
  %v58 = vld [vmem:[%s0 + $0x58] sm:$0xff]
  %v59 = vld [vmem:[%s0 + $0x60] sm:$0xff]
  %v60 = vld [vmem:[%s0 + $0x68] sm:$0xff]
  %v61 = vld [vmem:[%s0 + $0x70] sm:$0xff]
  %v62 = vld [vmem:[%s0 + $0x78] sm:$0xff]
  %v63 = vld [vmem:[%s1] sm:$0xff]
  %v64 = vld [vmem:[%s1 + $0x8] sm:$0xff]
  %v65 = vld [vmem:[%s1 + $0x10] sm:$0xff]
  %v66 = vld [vmem:[%s1 + $0x18] sm:$0xff]
  %v67 = vld [vmem:[%s1 + $0x20] sm:$0xff]
  %v68 = vld [vmem:[%s1 + $0x28] sm:$0xff]
  %v69 = vld [vmem:[%s1 + $0x30] sm:$0xff]
  %v70 = vld [vmem:[%s1 + $0x38] sm:$0xff]
  %v71 = vld [vmem:[%s1 + $0x40] sm:$0xff]
  %v72 = vld [vmem:[%s1 + $0x48] sm:$0xff]
  %v73 = vld [vmem:[%s1 + $0x50] sm:$0xff]
  %v74 = vld [vmem:[%s1 + $0x58] sm:$0xff]
  %v75 = vld [vmem:[%s1 + $0x60] sm:$0xff]
  %v76 = vld [vmem:[%s1 + $0x68] sm:$0xff]
  %v77 = vld [vmem:[%s1 + $0x70] sm:$0xff]
  %v78 = vld [vmem:[%s1 + $0x78] sm:$0xff]
  %79 = vmatprep.subr.mxu0 0.0
  %80 = vmatpush1.msra.mxu0 %v63
  %81 = vmatprep.subr.mxu0 0.0
  %82 = vmatpush1.msra.mxu0 %v64
  %83 = vmatprep.subr.mxu0 0.0
  %84 = vmatpush1.msra.mxu0 %v65
  %85 = vmatprep.subr.mxu0 0.0
  %86 = vmatpush1.msra.mxu0 %v66
  %87 = vmatprep.subr.mxu0 0.0
  %88 = vmatpush1.msra.mxu0 %v67
  %89 = vmatprep.subr.mxu0 0.0
  %90 = vmatpush1.msra.mxu0 %v68
  %91 = vmatprep.subr.mxu0 0.0
  %92 = vmatpush1.msra.mxu0 %v69
  %93 = vmatprep.subr.mxu0 0.0
  %94 = vmatpush1.msra.mxu0 %v70
  %95 = vmatprep.subr.mxu0 0.0
  %96 = vmatpush1.msra.mxu0 %v71
  %97 = vmatprep.subr.mxu0 0.0
  %98 = vmatpush1.msra.mxu0 %v72
  %99 = vmatprep.subr.mxu0 0.0
  %100 = vmatpush1.msra.mxu0 %v73
  %101 = vmatprep.subr.mxu0 0.0
  %102 = vmatpush1.msra.mxu0 %v74
  %103 = vmatprep.subr.mxu0 0.0
  %104 = vmatpush1.msra.mxu0 %v75
  %105 = vmatprep.subr.mxu0 0.0
  %106 = vmatpush1.msra.mxu0 %v76
  %107 = vmatprep.subr.mxu0 0.0
  %108 = vmatpush1.msra.mxu0 %v77
  %109 = vmatprep.subr.mxu0 0.0
  %110 = vmatpush1.msra.mxu0 %v78
  %111 = vmatprep.subr.mxu0 0.0
  %112 = vmatpush1.msra.mxu0 0.0
  %113 = vmatprep.subr.mxu0 0.0
  %114 = vmatpush1.msra.mxu0 0.0
  %115 = vmatprep.subr.mxu0 0.0
  %116 = vmatpush1.msra.mxu0 0.0
  %117 = vmatprep.subr.mxu0 0.0
  %118 = vmatpush1.msra.mxu0 0.0
  %119 = vmatprep.subr.mxu0 0.0
  %120 = vmatpush1.msra.mxu0 0.0
  %121 = vmatprep.subr.mxu0 0.0
  %122 = vmatpush1.msra.mxu0 0.0
  %123 = vmatprep.subr.mxu0 0.0
  %124 = vmatpush1.msra.mxu0 0.0
  %125 = vmatprep.subr.mxu0 0.0
  %126 = vmatpush1.msra.mxu0 0.0
  %127 = vmatprep.subr.mxu0 0.0
  %128 = vmatpush1.msra.mxu0 0.0
  %129 = vmatprep.subr.mxu0 0.0
  %130 = vmatpush1.msra.mxu0 0.0
  %131 = vmatprep.subr.mxu0 0.0
  %132 = vmatpush1.msra.mxu0 0.0
  %133 = vmatprep.subr.mxu0 0.0
  %134 = vmatpush1.msra.mxu0 0.0
  %135 = vmatprep.subr.mxu0 0.0
  %136 = vmatpush1.msra.mxu0 0.0
  %137 = vmatprep.subr.mxu0 0.0
  %138 = vmatpush1.msra.mxu0 0.0
  %139 = vmatprep.subr.mxu0 0.0
  %140 = vmatpush1.msra.mxu0 0.0
  %141 = vmatprep.subr.mxu0 0.0
  %142 = vmatpush1.msra.mxu0 0.0
  %143 = vmatprep.mubr.f32.mxu0 0.0
  %144 = vmatmul.mubr.f32.gmra.mrb[0].mxu0 %v47
  %v145 = vpop.f32.mrb[0].mxu0
  %v146 = vadd.f32 0.0, %v145
  %v147 = vpop.f32.mrb[0].mxu0
  %148 = vmatprep.mubr.f32.mxu0 0.0
  %149 = vmatmul.mubr.f32.gmra.mrb[0].mxu0 %v48
  %v150 = vpop.f32.mrb[0].mxu0
  %v151 = vadd.f32 0.0, %v150
  %v152 = vpop.f32.mrb[0].mxu0
  %153 = vmatprep.mubr.f32.mxu0 0.0
  %154 = vmatmul.mubr.f32.gmra.mrb[0].mxu0 %v49
  %v155 = vpop.f32.mrb[0].mxu0
  %v156 = vadd.f32 0.0, %v155
  %v157 = vpop.f32.mrb[0].mxu0
  %158 = vmatprep.mubr.f32.mxu0 0.0
  %159 = vmatmul.mubr.f32.gmra.mrb[0].mxu0 %v50
  %v160 = vpop.f32.mrb[0].mxu0
  %v161 = vadd.f32 0.0, %v160
  %v162 = vpop.f32.mrb[0].mxu0
  %163 = vmatprep.mubr.f32.mxu0 0.0
  %164 = vmatmul.mubr.f32.gmra.mrb[0].mxu0 %v51
  %v165 = vpop.f32.mrb[0].mxu0
  %v166 = vadd.f32 0.0, %v165
  %v167 = vpop.f32.mrb[0].mxu0
  %168 = vmatprep.mubr.f32.mxu0 0.0
  %169 = vmatmul.mubr.f32.gmra.mrb[0].mxu0 %v52
  %v170 = vpop.f32.mrb[0].mxu0
  %v171 = vadd.f32 0.0, %v170
  %v172 = vpop.f32.mrb[0].mxu0
  %173 = vmatprep.mubr.f32.mxu0 0.0
  %174 = vmatmul.mubr.f32.gmra.mrb[0].mxu0 %v53
  %v175 = vpop.f32.mrb[0].mxu0
  %v176 = vadd.f32 0.0, %v175
  %v177 = vpop.f32.mrb[0].mxu0
  %178 = vmatprep.mubr.f32.mxu0 0.0
  %179 = vmatmul.mubr.f32.gmra.mrb[0].mxu0 %v54
  %v180 = vpop.f32.mrb[0].mxu0
  %v181 = vadd.f32 0.0, %v180
  %v182 = vpop.f32.mrb[0].mxu0
  %183 = vmatprep.mubr.f32.mxu0 0.0
  %184 = vmatmul.mubr.f32.gmra.mrb[0].mxu0 %v55
  %v185 = vpop.f32.mrb[0].mxu0
  %v186 = vadd.f32 0.0, %v185
  %v187 = vpop.f32.mrb[0].mxu0
  %188 = vmatprep.mubr.f32.mxu0 0.0
  %189 = vmatmul.mubr.f32.gmra.mrb[0].mxu0 %v56
  %v190 = vpop.f32.mrb[0].mxu0
  %v191 = vadd.f32 0.0, %v190
  %v192 = vpop.f32.mrb[0].mxu0
  %193 = vmatprep.mubr.f32.mxu0 0.0
  %194 = vmatmul.mubr.f32.gmra.mrb[0].mxu0 %v57
  %v195 = vpop.f32.mrb[0].mxu0
  %v196 = vadd.f32 0.0, %v195
  %v197 = vpop.f32.mrb[0].mxu0
  %198 = vmatprep.mubr.f32.mxu0 0.0
  %199 = vmatmul.mubr.f32.gmra.mrb[0].mxu0 %v58
  %v200 = vpop.f32.mrb[0].mxu0
  %v201 = vadd.f32 0.0, %v200
  %v202 = vpop.f32.mrb[0].mxu0
  %203 = vmatprep.mubr.f32.mxu0 0.0
  %204 = vmatmul.mubr.f32.gmra.mrb[0].mxu0 %v59
  %v205 = vpop.f32.mrb[0].mxu0
  %v206 = vadd.f32 0.0, %v205
  %v207 = vpop.f32.mrb[0].mxu0
  %208 = vmatprep.mubr.f32.mxu0 0.0
  %209 = vmatmul.mubr.f32.gmra.mrb[0].mxu0 %v60
  %v210 = vpop.f32.mrb[0].mxu0
  %v211 = vadd.f32 0.0, %v210
  %v212 = vpop.f32.mrb[0].mxu0
  %213 = vmatprep.mubr.f32.mxu0 0.0
  %214 = vmatmul.mubr.f32.gmra.mrb[0].mxu0 %v61
  %v215 = vpop.f32.mrb[0].mxu0
  %v216 = vadd.f32 0.0, %v215
  %v217 = vpop.f32.mrb[0].mxu0
  %218 = vmatprep.mubr.f32.mxu0 0.0
  %219 = vmatmul.mubr.f32.gmra.mrb[0].mxu0 %v62
  %v220 = vpop.f32.mrb[0].mxu0
  %v221 = vadd.f32 0.0, %v220
  %v222 = vpop.f32.mrb[0].mxu0
  %223 = vdwg.mxu0
  %v224 = vadd.f32 %v31, %v146
  %v225 = vadd.f32 %v32, %v151
  %v226 = vadd.f32 %v33, %v156
  %v227 = vadd.f32 %v34, %v161
  %v228 = vadd.f32 %v35, %v166
  %v229 = vadd.f32 %v36, %v171
  %v230 = vadd.f32 %v37, %v176
  %v231 = vadd.f32 %v38, %v181
  %v232 = vadd.f32 %v39, %v186
  %v233 = vadd.f32 %v40, %v191
  %v234 = vadd.f32 %v41, %v196
  %v235 = vadd.f32 %v42, %v201
  %v236 = vadd.f32 %v43, %v206
  %v237 = vadd.f32 %v44, %v211
  %v238 = vadd.f32 %v45, %v216
  %v239 = vadd.f32 %v46, %v221
  %240 = vst [vmem:[#allocation2] sm:$0xff] %v224
  %241 = vst [vmem:[#allocation2 + $0x8] sm:$0xff] %v225
  %242 = vst [vmem:[#allocation2 + $0x10] sm:$0xff] %v226
  %243 = vst [vmem:[#allocation2 + $0x18] sm:$0xff] %v227
  %244 = vst [vmem:[#allocation2 + $0x20] sm:$0xff] %v228
  %245 = vst [vmem:[#allocation2 + $0x28] sm:$0xff] %v229
  %246 = vst [vmem:[#allocation2 + $0x30] sm:$0xff] %v230
  %247 = vst [vmem:[#allocation2 + $0x38] sm:$0xff] %v231
  %248 = vst [vmem:[#allocation2 + $0x40] sm:$0xff] %v232
  %249 = vst [vmem:[#allocation2 + $0x48] sm:$0xff] %v233
  %250 = vst [vmem:[#allocation2 + $0x50] sm:$0xff] %v234
  %251 = vst [vmem:[#allocation2 + $0x58] sm:$0xff] %v235
  %252 = vst [vmem:[#allocation2 + $0x60] sm:$0xff] %v236
  %253 = vst [vmem:[#allocation2 + $0x68] sm:$0xff] %v237
  %254 = vst [vmem:[#allocation2 + $0x70] sm:$0xff] %v238
  %255 = vst [vmem:[#allocation2 + $0x78] sm:$0xff] %v239
  // Predicated region
  $region14: #{preact_basic_block.9} parent=0 // pred_check
    %p256 = pneg %p11
  $region15: #{preact_basic_block.9} parent=0 // pred_check_branch
    %258 = sbr.rel (%p256) target = $region17
  $region16: #{preact_basic_block.9} parent=0 // pred_region
    %v259 = vld [vmem:[#allocation2] sm:$0xff]
    %v260 = vld [vmem:[#allocation2 + $0x8] sm:$0xff]
    %v261 = vld [vmem:[#allocation2 + $0x10] sm:$0xff]
    %v262 = vld [vmem:[#allocation2 + $0x18] sm:$0xff]
    %v263 = vld [vmem:[#allocation2 + $0x20] sm:$0xff]
    %v264 = vld [vmem:[#allocation2 + $0x28] sm:$0xff]
    %v265 = vld [vmem:[#allocation2 + $0x30] sm:$0xff]
    %v266 = vld [vmem:[#allocation2 + $0x38] sm:$0xff]
    %v267 = vld [vmem:[#allocation2 + $0x40] sm:$0xff]
    %v268 = vld [vmem:[#allocation2 + $0x48] sm:$0xff]
    %v269 = vld [vmem:[#allocation2 + $0x50] sm:$0xff]
    %v270 = vld [vmem:[#allocation2 + $0x58] sm:$0xff]
    %v271 = vld [vmem:[#allocation2 + $0x60] sm:$0xff]
    %v272 = vld [vmem:[#allocation2 + $0x68] sm:$0xff]
    %v273 = vld [vmem:[#allocation2 + $0x70] sm:$0xff]
    %v274 = vld [vmem:[#allocation2 + $0x78] sm:$0xff]
    %275 = vst [vmem:[%s2] sm:$0xff] %v259
    %276 = vst [vmem:[%s2 + $0x8] sm:$0xff] %v260
    %277 = vst [vmem:[%s2 + $0x10] sm:$0xff] %v261
    %278 = vst [vmem:[%s2 + $0x18] sm:$0xff] %v262
    %279 = vst [vmem:[%s2 + $0x20] sm:$0xff] %v263
    %280 = vst [vmem:[%s2 + $0x28] sm:$0xff] %v264
    %281 = vst [vmem:[%s2 + $0x30] sm:$0xff] %v265
    %282 = vst [vmem:[%s2 + $0x38] sm:$0xff] %v266
    %283 = vst [vmem:[%s2 + $0x40] sm:$0xff] %v267
    %284 = vst [vmem:[%s2 + $0x48] sm:$0xff] %v268
    %285 = vst [vmem:[%s2 + $0x50] sm:$0xff] %v269
    %286 = vst [vmem:[%s2 + $0x58] sm:$0xff] %v270
    %287 = vst [vmem:[%s2 + $0x60] sm:$0xff] %v271
    %288 = vst [vmem:[%s2 + $0x68] sm:$0xff] %v272
    %289 = vst [vmem:[%s2 + $0x70] sm:$0xff] %v273
    %290 = vst [vmem:[%s2 + $0x78] sm:$0xff] %v274
  $region17: #{preact_basic_block.9} parent=0 // pred_fallthru
    _
  // Predicated region
  $region18: #{preact_basic_block.9} parent=0 // pred_check
    _
  $region19: #{preact_basic_block.9} parent=0 // pred_check_branch
    %292 = sbr.rel (0) target = $region21
  $region20: #{preact_basic_block.9} parent=0 // pred_region
    _
  $region21: #{preact_basic_block.9} parent=0 // pred_fallthru
    _
  // Predicated region
  $region22: #{preact_basic_block.9} parent=0 // pred_check
    _
  $region23: #{preact_basic_block.9} parent=0 // pred_check_branch
    %294 = sbr.rel (0) target = $region25
  $region24: #{preact_basic_block.9} parent=0 // pred_region
    _
  $region25: #{preact_basic_block.9} parent=0 // pred_fallthru
    _

// kernel: preact_basic_block.12
$region0: #{preact_basic_block.12}
  #allocation0 [shape = 'u32[]', space=smem, size = 0x4, offset = 0x4, fixed_abs, tag = 'smem constant byte address 0x4 - core index']
  #allocation1 [shape = 'u32[144,128]{1,0:T(1,128)}', space=vmem, size = 0x12000, scoped, tag = 'internal scratch']
  #allocation2 [shape = 'f32[128,128]{1,0:T(8,128)}', space=vmem, size = 0x10000, scoped, tag = 'scratch operand']
  %s0 = inlined_call_operand.vmem [shape: f32[128,128], index: 0, kind: input, shape index: {}]
  %s1 = inlined_call_operand.vmem [shape: f32[128,128], index: 1, kind: input, shape index: {}]
  %s2 = inlined_call_operand.vmem [shape: f32[1,128], index: 2, kind: input, shape index: {}]
  %s3 = inlined_call_operand.vmem [shape: f32[128,128], index: 3, kind: output, shape index: {}]
  %s4 = sld [smem:[#allocation0]]
  $region30: #{preact_basic_block.12} parent=0
    _
  %s6 = ssub.s32 1, %s4
  %s7 = scalar_select 0, %s6, %s4
  // Predicated region
  $region2: #{preact_basic_block.12} parent=0 // pred_check
    _
  $region3: #{preact_basic_block.12} parent=0 // pred_check_branch
    %9 = sbr.rel (0) target = $region5
  $region4: #{preact_basic_block.12} parent=0 // pred_region
    _
  $region5: #{preact_basic_block.12} parent=0 // pred_fallthru
    _
  // Predicated region
  $region6: #{preact_basic_block.12} parent=0 // pred_check
    _
  $region7: #{preact_basic_block.12} parent=0 // pred_check_branch
    %11 = sbr.rel (0) target = $region9
  $region8: #{preact_basic_block.12} parent=0 // pred_region
    _
  $region9: #{preact_basic_block.12} parent=0 // pred_fallthru
    _
  // Predicated region
  $region10: #{preact_basic_block.12} parent=0 // pred_check
    _
  $region11: #{preact_basic_block.12} parent=0 // pred_check_branch
    %13 = sbr.rel (0) target = $region13
  $region12: #{preact_basic_block.12} parent=0 // pred_region
    _
  $region13: #{preact_basic_block.12} parent=0 // pred_fallthru
    _
  %p14 = scmp.eq.s32.totalorder 0, 0
  // Predicated region
  $region14: #{preact_basic_block.12} parent=0 // pred_check
    %p15 = pneg %p14
  $region15: #{preact_basic_block.12} parent=0 // pred_check_branch
    %17 = sbr.rel (%p15) target = $region17
  $region16: #{preact_basic_block.12} parent=0 // pred_region
    %18 = vst [vmem:[#allocation2] sm:$0xff] 0.0
    %19 = vst [vmem:[#allocation2 + $0x8] sm:$0xff] 0.0
    %20 = vst [vmem:[#allocation2 + $0x10] sm:$0xff] 0.0
    %21 = vst [vmem:[#allocation2 + $0x18] sm:$0xff] 0.0
    %22 = vst [vmem:[#allocation2 + $0x20] sm:$0xff] 0.0
    %23 = vst [vmem:[#allocation2 + $0x28] sm:$0xff] 0.0
    %24 = vst [vmem:[#allocation2 + $0x30] sm:$0xff] 0.0
    %25 = vst [vmem:[#allocation2 + $0x38] sm:$0xff] 0.0
    %26 = vst [vmem:[#allocation2 + $0x40] sm:$0xff] 0.0
    %27 = vst [vmem:[#allocation2 + $0x48] sm:$0xff] 0.0
    %28 = vst [vmem:[#allocation2 + $0x50] sm:$0xff] 0.0
    %29 = vst [vmem:[#allocation2 + $0x58] sm:$0xff] 0.0
    %30 = vst [vmem:[#allocation2 + $0x60] sm:$0xff] 0.0
    %31 = vst [vmem:[#allocation2 + $0x68] sm:$0xff] 0.0
    %32 = vst [vmem:[#allocation2 + $0x70] sm:$0xff] 0.0
    %33 = vst [vmem:[#allocation2 + $0x78] sm:$0xff] 0.0
  $region17: #{preact_basic_block.12} parent=0 // pred_fallthru
    _
  %v34 = vld [vmem:[#allocation2] sm:$0xff]
  %v35 = vld [vmem:[#allocation2 + $0x8] sm:$0xff]
  %v36 = vld [vmem:[#allocation2 + $0x10] sm:$0xff]
  %v37 = vld [vmem:[#allocation2 + $0x18] sm:$0xff]
  %v38 = vld [vmem:[#allocation2 + $0x20] sm:$0xff]
  %v39 = vld [vmem:[#allocation2 + $0x28] sm:$0xff]
  %v40 = vld [vmem:[#allocation2 + $0x30] sm:$0xff]
  %v41 = vld [vmem:[#allocation2 + $0x38] sm:$0xff]
  %v42 = vld [vmem:[#allocation2 + $0x40] sm:$0xff]
  %v43 = vld [vmem:[#allocation2 + $0x48] sm:$0xff]
  %v44 = vld [vmem:[#allocation2 + $0x50] sm:$0xff]
  %v45 = vld [vmem:[#allocation2 + $0x58] sm:$0xff]
  %v46 = vld [vmem:[#allocation2 + $0x60] sm:$0xff]
  %v47 = vld [vmem:[#allocation2 + $0x68] sm:$0xff]
  %v48 = vld [vmem:[#allocation2 + $0x70] sm:$0xff]
  %v49 = vld [vmem:[#allocation2 + $0x78] sm:$0xff]
  %v50 = vld [vmem:[%s0] sm:$0xff]
  %v51 = vld [vmem:[%s0 + $0x8] sm:$0xff]
  %v52 = vld [vmem:[%s0 + $0x10] sm:$0xff]
  %v53 = vld [vmem:[%s0 + $0x18] sm:$0xff]
  %v54 = vld [vmem:[%s0 + $0x20] sm:$0xff]
  %v55 = vld [vmem:[%s0 + $0x28] sm:$0xff]
  %v56 = vld [vmem:[%s0 + $0x30] sm:$0xff]
  %v57 = vld [vmem:[%s0 + $0x38] sm:$0xff]
  %v58 = vld [vmem:[%s0 + $0x40] sm:$0xff]
  %v59 = vld [vmem:[%s0 + $0x48] sm:$0xff]
  %v60 = vld [vmem:[%s0 + $0x50] sm:$0xff]
  %v61 = vld [vmem:[%s0 + $0x58] sm:$0xff]
  %v62 = vld [vmem:[%s0 + $0x60] sm:$0xff]
  %v63 = vld [vmem:[%s0 + $0x68] sm:$0xff]
  %v64 = vld [vmem:[%s0 + $0x70] sm:$0xff]
  %v65 = vld [vmem:[%s0 + $0x78] sm:$0xff]
  %v66 = vld [vmem:[%s1] sm:$0xff]
  %v67 = vld [vmem:[%s1 + $0x8] sm:$0xff]
  %v68 = vld [vmem:[%s1 + $0x10] sm:$0xff]
  %v69 = vld [vmem:[%s1 + $0x18] sm:$0xff]
  %v70 = vld [vmem:[%s1 + $0x20] sm:$0xff]
  %v71 = vld [vmem:[%s1 + $0x28] sm:$0xff]
  %v72 = vld [vmem:[%s1 + $0x30] sm:$0xff]
  %v73 = vld [vmem:[%s1 + $0x38] sm:$0xff]
  %v74 = vld [vmem:[%s1 + $0x40] sm:$0xff]
  %v75 = vld [vmem:[%s1 + $0x48] sm:$0xff]
  %v76 = vld [vmem:[%s1 + $0x50] sm:$0xff]
  %v77 = vld [vmem:[%s1 + $0x58] sm:$0xff]
  %v78 = vld [vmem:[%s1 + $0x60] sm:$0xff]
  %v79 = vld [vmem:[%s1 + $0x68] sm:$0xff]
  %v80 = vld [vmem:[%s1 + $0x70] sm:$0xff]
  %v81 = vld [vmem:[%s1 + $0x78] sm:$0xff]
  %82 = vmatprep.subr.mxu0 0.0
  %83 = vmatpush1.msra.mxu0 %v66
  %84 = vmatprep.subr.mxu0 0.0
  %85 = vmatpush1.msra.mxu0 %v67
  %86 = vmatprep.subr.mxu0 0.0
  %87 = vmatpush1.msra.mxu0 %v68
  %88 = vmatprep.subr.mxu0 0.0
  %89 = vmatpush1.msra.mxu0 %v69
  %90 = vmatprep.subr.mxu0 0.0
  %91 = vmatpush1.msra.mxu0 %v70
  %92 = vmatprep.subr.mxu0 0.0
  %93 = vmatpush1.msra.mxu0 %v71
  %94 = vmatprep.subr.mxu0 0.0
  %95 = vmatpush1.msra.mxu0 %v72
  %96 = vmatprep.subr.mxu0 0.0
  %97 = vmatpush1.msra.mxu0 %v73
  %98 = vmatprep.subr.mxu0 0.0
  %99 = vmatpush1.msra.mxu0 %v74
  %100 = vmatprep.subr.mxu0 0.0
  %101 = vmatpush1.msra.mxu0 %v75
  %102 = vmatprep.subr.mxu0 0.0
  %103 = vmatpush1.msra.mxu0 %v76
  %104 = vmatprep.subr.mxu0 0.0
  %105 = vmatpush1.msra.mxu0 %v77
  %106 = vmatprep.subr.mxu0 0.0
  %107 = vmatpush1.msra.mxu0 %v78
  %108 = vmatprep.subr.mxu0 0.0
  %109 = vmatpush1.msra.mxu0 %v79
  %110 = vmatprep.subr.mxu0 0.0
  %111 = vmatpush1.msra.mxu0 %v80
  %112 = vmatprep.subr.mxu0 0.0
  %113 = vmatpush1.msra.mxu0 %v81
  %114 = vmatprep.subr.mxu0 0.0
  %115 = vmatpush1.msra.mxu0 0.0
  %116 = vmatprep.subr.mxu0 0.0
  %117 = vmatpush1.msra.mxu0 0.0
  %118 = vmatprep.subr.mxu0 0.0
  %119 = vmatpush1.msra.mxu0 0.0
  %120 = vmatprep.subr.mxu0 0.0
  %121 = vmatpush1.msra.mxu0 0.0
  %122 = vmatprep.subr.mxu0 0.0
  %123 = vmatpush1.msra.mxu0 0.0
  %124 = vmatprep.subr.mxu0 0.0
  %125 = vmatpush1.msra.mxu0 0.0
  %126 = vmatprep.subr.mxu0 0.0
  %127 = vmatpush1.msra.mxu0 0.0
  %128 = vmatprep.subr.mxu0 0.0
  %129 = vmatpush1.msra.mxu0 0.0
  %130 = vmatprep.subr.mxu0 0.0
  %131 = vmatpush1.msra.mxu0 0.0
  %132 = vmatprep.subr.mxu0 0.0
  %133 = vmatpush1.msra.mxu0 0.0
  %134 = vmatprep.subr.mxu0 0.0
  %135 = vmatpush1.msra.mxu0 0.0
  %136 = vmatprep.subr.mxu0 0.0
  %137 = vmatpush1.msra.mxu0 0.0
  %138 = vmatprep.subr.mxu0 0.0
  %139 = vmatpush1.msra.mxu0 0.0
  %140 = vmatprep.subr.mxu0 0.0
  %141 = vmatpush1.msra.mxu0 0.0
  %142 = vmatprep.subr.mxu0 0.0
  %143 = vmatpush1.msra.mxu0 0.0
  %144 = vmatprep.subr.mxu0 0.0
  %145 = vmatpush1.msra.mxu0 0.0
  %146 = vmatprep.mubr.f32.mxu0 0.0
  %147 = vmatmul.mubr.f32.gmra.mrb[0].mxu0 %v50
  %v148 = vpop.f32.mrb[0].mxu0
  %v149 = vadd.f32 0.0, %v148
  %v150 = vpop.f32.mrb[0].mxu0
  %151 = vmatprep.mubr.f32.mxu0 0.0
  %152 = vmatmul.mubr.f32.gmra.mrb[0].mxu0 %v51
  %v153 = vpop.f32.mrb[0].mxu0
  %v154 = vadd.f32 0.0, %v153
  %v155 = vpop.f32.mrb[0].mxu0
  %156 = vmatprep.mubr.f32.mxu0 0.0
  %157 = vmatmul.mubr.f32.gmra.mrb[0].mxu0 %v52
  %v158 = vpop.f32.mrb[0].mxu0
  %v159 = vadd.f32 0.0, %v158
  %v160 = vpop.f32.mrb[0].mxu0
  %161 = vmatprep.mubr.f32.mxu0 0.0
  %162 = vmatmul.mubr.f32.gmra.mrb[0].mxu0 %v53
  %v163 = vpop.f32.mrb[0].mxu0
  %v164 = vadd.f32 0.0, %v163
  %v165 = vpop.f32.mrb[0].mxu0
  %166 = vmatprep.mubr.f32.mxu0 0.0
  %167 = vmatmul.mubr.f32.gmra.mrb[0].mxu0 %v54
  %v168 = vpop.f32.mrb[0].mxu0
  %v169 = vadd.f32 0.0, %v168
  %v170 = vpop.f32.mrb[0].mxu0
  %171 = vmatprep.mubr.f32.mxu0 0.0
  %172 = vmatmul.mubr.f32.gmra.mrb[0].mxu0 %v55
  %v173 = vpop.f32.mrb[0].mxu0
  %v174 = vadd.f32 0.0, %v173
  %v175 = vpop.f32.mrb[0].mxu0
  %176 = vmatprep.mubr.f32.mxu0 0.0
  %177 = vmatmul.mubr.f32.gmra.mrb[0].mxu0 %v56
  %v178 = vpop.f32.mrb[0].mxu0
  %v179 = vadd.f32 0.0, %v178
  %v180 = vpop.f32.mrb[0].mxu0
  %181 = vmatprep.mubr.f32.mxu0 0.0
  %182 = vmatmul.mubr.f32.gmra.mrb[0].mxu0 %v57
  %v183 = vpop.f32.mrb[0].mxu0
  %v184 = vadd.f32 0.0, %v183
  %v185 = vpop.f32.mrb[0].mxu0
  %186 = vmatprep.mubr.f32.mxu0 0.0
  %187 = vmatmul.mubr.f32.gmra.mrb[0].mxu0 %v58
  %v188 = vpop.f32.mrb[0].mxu0
  %v189 = vadd.f32 0.0, %v188
  %v190 = vpop.f32.mrb[0].mxu0
  %191 = vmatprep.mubr.f32.mxu0 0.0
  %192 = vmatmul.mubr.f32.gmra.mrb[0].mxu0 %v59
  %v193 = vpop.f32.mrb[0].mxu0
  %v194 = vadd.f32 0.0, %v193
  %v195 = vpop.f32.mrb[0].mxu0
  %196 = vmatprep.mubr.f32.mxu0 0.0
  %197 = vmatmul.mubr.f32.gmra.mrb[0].mxu0 %v60
  %v198 = vpop.f32.mrb[0].mxu0
  %v199 = vadd.f32 0.0, %v198
  %v200 = vpop.f32.mrb[0].mxu0
  %201 = vmatprep.mubr.f32.mxu0 0.0
  %202 = vmatmul.mubr.f32.gmra.mrb[0].mxu0 %v61
  %v203 = vpop.f32.mrb[0].mxu0
  %v204 = vadd.f32 0.0, %v203
  %v205 = vpop.f32.mrb[0].mxu0
  %206 = vmatprep.mubr.f32.mxu0 0.0
  %207 = vmatmul.mubr.f32.gmra.mrb[0].mxu0 %v62
  %v208 = vpop.f32.mrb[0].mxu0
  %v209 = vadd.f32 0.0, %v208
  %v210 = vpop.f32.mrb[0].mxu0
  %211 = vmatprep.mubr.f32.mxu0 0.0
  %212 = vmatmul.mubr.f32.gmra.mrb[0].mxu0 %v63
  %v213 = vpop.f32.mrb[0].mxu0
  %v214 = vadd.f32 0.0, %v213
  %v215 = vpop.f32.mrb[0].mxu0
  %216 = vmatprep.mubr.f32.mxu0 0.0
  %217 = vmatmul.mubr.f32.gmra.mrb[0].mxu0 %v64
  %v218 = vpop.f32.mrb[0].mxu0
  %v219 = vadd.f32 0.0, %v218
  %v220 = vpop.f32.mrb[0].mxu0
  %221 = vmatprep.mubr.f32.mxu0 0.0
  %222 = vmatmul.mubr.f32.gmra.mrb[0].mxu0 %v65
  %v223 = vpop.f32.mrb[0].mxu0
  %v224 = vadd.f32 0.0, %v223
  %v225 = vpop.f32.mrb[0].mxu0
  %226 = vdwg.mxu0
  %v227 = vadd.f32 %v34, %v149
  %v228 = vadd.f32 %v35, %v154
  %v229 = vadd.f32 %v36, %v159
  %v230 = vadd.f32 %v37, %v164
  %v231 = vadd.f32 %v38, %v169
  %v232 = vadd.f32 %v39, %v174
  %v233 = vadd.f32 %v40, %v179
  %v234 = vadd.f32 %v41, %v184
  %v235 = vadd.f32 %v42, %v189
  %v236 = vadd.f32 %v43, %v194
  %v237 = vadd.f32 %v44, %v199
  %v238 = vadd.f32 %v45, %v204
  %v239 = vadd.f32 %v46, %v209
  %v240 = vadd.f32 %v47, %v214
  %v241 = vadd.f32 %v48, %v219
  %v242 = vadd.f32 %v49, %v224
  %243 = vst [vmem:[#allocation2] sm:$0xff] %v227
  %244 = vst [vmem:[#allocation2 + $0x8] sm:$0xff] %v228
  %245 = vst [vmem:[#allocation2 + $0x10] sm:$0xff] %v229
  %246 = vst [vmem:[#allocation2 + $0x18] sm:$0xff] %v230
  %247 = vst [vmem:[#allocation2 + $0x20] sm:$0xff] %v231
  %248 = vst [vmem:[#allocation2 + $0x28] sm:$0xff] %v232
  %249 = vst [vmem:[#allocation2 + $0x30] sm:$0xff] %v233
  %250 = vst [vmem:[#allocation2 + $0x38] sm:$0xff] %v234
  %251 = vst [vmem:[#allocation2 + $0x40] sm:$0xff] %v235
  %252 = vst [vmem:[#allocation2 + $0x48] sm:$0xff] %v236
  %253 = vst [vmem:[#allocation2 + $0x50] sm:$0xff] %v237
  %254 = vst [vmem:[#allocation2 + $0x58] sm:$0xff] %v238
  %255 = vst [vmem:[#allocation2 + $0x60] sm:$0xff] %v239
  %256 = vst [vmem:[#allocation2 + $0x68] sm:$0xff] %v240
  %257 = vst [vmem:[#allocation2 + $0x70] sm:$0xff] %v241
  %258 = vst [vmem:[#allocation2 + $0x78] sm:$0xff] %v242
  // Predicated region
  $region18: #{preact_basic_block.12} parent=0 // pred_check
    %p259 = pneg %p14
  $region19: #{preact_basic_block.12} parent=0 // pred_check_branch
    %261 = sbr.rel (%p259) target = $region21
  $region20: #{preact_basic_block.12} parent=0 // pred_region
    %v262 = vld [vmem:[#allocation2] sm:$0xff]
    %v263 = vld [vmem:[#allocation2 + $0x8] sm:$0xff]
    %v264 = vld [vmem:[#allocation2 + $0x10] sm:$0xff]
    %v265 = vld [vmem:[#allocation2 + $0x18] sm:$0xff]
    %v266 = vld [vmem:[#allocation2 + $0x20] sm:$0xff]
    %v267 = vld [vmem:[#allocation2 + $0x28] sm:$0xff]
    %v268 = vld [vmem:[#allocation2 + $0x30] sm:$0xff]
    %v269 = vld [vmem:[#allocation2 + $0x38] sm:$0xff]
    %v270 = vld [vmem:[#allocation2 + $0x40] sm:$0xff]
    %v271 = vld [vmem:[#allocation2 + $0x48] sm:$0xff]
    %v272 = vld [vmem:[#allocation2 + $0x50] sm:$0xff]
    %v273 = vld [vmem:[#allocation2 + $0x58] sm:$0xff]
    %v274 = vld [vmem:[#allocation2 + $0x60] sm:$0xff]
    %v275 = vld [vmem:[#allocation2 + $0x68] sm:$0xff]
    %v276 = vld [vmem:[#allocation2 + $0x70] sm:$0xff]
    %v277 = vld [vmem:[#allocation2 + $0x78] sm:$0xff]
    %v278 = vld [vmem:[%s2] sm:$0x1]
    %v280 = vlaneseq
    %v281 = vshrl.u32 %v280, 7
    %v282 = vsub.s32 0, %v281
    %v283 = vrot.slane %v278, %v282
    %v285 = vadd.f32 %v262, %v283
    %v286 = vadd.f32 %v263, %v283
    %v287 = vadd.f32 %v264, %v283
    %v288 = vadd.f32 %v265, %v283
    %v289 = vadd.f32 %v266, %v283
    %v290 = vadd.f32 %v267, %v283
    %v291 = vadd.f32 %v268, %v283
    %v292 = vadd.f32 %v269, %v283
    %v293 = vadd.f32 %v270, %v283
    %v294 = vadd.f32 %v271, %v283
    %v295 = vadd.f32 %v272, %v283
    %v296 = vadd.f32 %v273, %v283
    %v297 = vadd.f32 %v274, %v283
    %v298 = vadd.f32 %v275, %v283
    %v299 = vadd.f32 %v276, %v283
    %v300 = vadd.f32 %v277, %v283
    %301 = vst [vmem:[%s3] sm:$0xff] %v285
    %302 = vst [vmem:[%s3 + $0x8] sm:$0xff] %v286
    %303 = vst [vmem:[%s3 + $0x10] sm:$0xff] %v287
    %304 = vst [vmem:[%s3 + $0x18] sm:$0xff] %v288
    %305 = vst [vmem:[%s3 + $0x20] sm:$0xff] %v289
    %306 = vst [vmem:[%s3 + $0x28] sm:$0xff] %v290
    %307 = vst [vmem:[%s3 + $0x30] sm:$0xff] %v291
    %308 = vst [vmem:[%s3 + $0x38] sm:$0xff] %v292
    %309 = vst [vmem:[%s3 + $0x40] sm:$0xff] %v293
    %310 = vst [vmem:[%s3 + $0x48] sm:$0xff] %v294
    %311 = vst [vmem:[%s3 + $0x50] sm:$0xff] %v295
    %312 = vst [vmem:[%s3 + $0x58] sm:$0xff] %v296
    %313 = vst [vmem:[%s3 + $0x60] sm:$0xff] %v297
    %314 = vst [vmem:[%s3 + $0x68] sm:$0xff] %v298
    %315 = vst [vmem:[%s3 + $0x70] sm:$0xff] %v299
    %316 = vst [vmem:[%s3 + $0x78] sm:$0xff] %v300
  $region21: #{preact_basic_block.12} parent=0 // pred_fallthru
    _
  // Predicated region
  $region22: #{preact_basic_block.12} parent=0 // pred_check
    _
  $region23: #{preact_basic_block.12} parent=0 // pred_check_branch
    %318 = sbr.rel (0) target = $region25
  $region24: #{preact_basic_block.12} parent=0 // pred_region
    _
  $region25: #{preact_basic_block.12} parent=0 // pred_fallthru
    _
  // Predicated region
  $region26: #{preact_basic_block.12} parent=0 // pred_check
    _
  $region27: #{preact_basic_block.12} parent=0 // pred_check_branch
    %320 = sbr.rel (0) target = $region29
  $region28: #{preact_basic_block.12} parent=0 // pred_region
    _
  $region29: #{preact_basic_block.12} parent=0 // pred_fallthru
    _

// kernel: preact_basic_block.13
$region0: #{preact_basic_block.13}
  #allocation0 [shape = 'u32[]', space=smem, size = 0x4, offset = 0x4, fixed_abs, tag = 'smem constant byte address 0x4 - core index']
  #allocation1 [shape = 'u32[144,128]{1,0:T(1,128)}', space=vmem, size = 0x12000, scoped, tag = 'internal scratch']
  #allocation2 [shape = 'f32[128,128]{1,0:T(8,128)}', space=vmem, size = 0x10000, scoped, tag = 'scratch operand']
  %s0 = inlined_call_operand.vmem [shape: f32[128,128], index: 0, kind: input, shape index: {}]
  %s1 = inlined_call_operand.vmem [shape: f32[128,128], index: 1, kind: input, shape index: {}]
  %s2 = inlined_call_operand.vmem [shape: f32[128,128], index: 2, kind: input, shape index: {}]
  %s3 = inlined_call_operand.vmem [shape: f32[128,128], index: 3, kind: output, shape index: {}]
  %s4 = sld [smem:[#allocation0]]
  $region30: #{preact_basic_block.13} parent=0
    _
  %s6 = ssub.s32 1, %s4
  %s7 = scalar_select 0, %s6, %s4
  // Predicated region
  $region2: #{preact_basic_block.13} parent=0 // pred_check
    _
  $region3: #{preact_basic_block.13} parent=0 // pred_check_branch
    %9 = sbr.rel (0) target = $region5
  $region4: #{preact_basic_block.13} parent=0 // pred_region
    _
  $region5: #{preact_basic_block.13} parent=0 // pred_fallthru
    _
  // Predicated region
  $region6: #{preact_basic_block.13} parent=0 // pred_check
    _
  $region7: #{preact_basic_block.13} parent=0 // pred_check_branch
    %11 = sbr.rel (0) target = $region9
  $region8: #{preact_basic_block.13} parent=0 // pred_region
    _
  $region9: #{preact_basic_block.13} parent=0 // pred_fallthru
    _
  // Predicated region
  $region10: #{preact_basic_block.13} parent=0 // pred_check
    _
  $region11: #{preact_basic_block.13} parent=0 // pred_check_branch
    %13 = sbr.rel (0) target = $region13
  $region12: #{preact_basic_block.13} parent=0 // pred_region
    _
  $region13: #{preact_basic_block.13} parent=0 // pred_fallthru
    _
  %p14 = scmp.eq.s32.totalorder 0, 0
  // Predicated region
  $region14: #{preact_basic_block.13} parent=0 // pred_check
    %p15 = pneg %p14
  $region15: #{preact_basic_block.13} parent=0 // pred_check_branch
    %17 = sbr.rel (%p15) target = $region17
  $region16: #{preact_basic_block.13} parent=0 // pred_region
    %18 = vst [vmem:[#allocation2] sm:$0xff] 0.0
    %19 = vst [vmem:[#allocation2 + $0x8] sm:$0xff] 0.0
    %20 = vst [vmem:[#allocation2 + $0x10] sm:$0xff] 0.0
    %21 = vst [vmem:[#allocation2 + $0x18] sm:$0xff] 0.0
    %22 = vst [vmem:[#allocation2 + $0x20] sm:$0xff] 0.0
    %23 = vst [vmem:[#allocation2 + $0x28] sm:$0xff] 0.0
    %24 = vst [vmem:[#allocation2 + $0x30] sm:$0xff] 0.0
    %25 = vst [vmem:[#allocation2 + $0x38] sm:$0xff] 0.0
    %26 = vst [vmem:[#allocation2 + $0x40] sm:$0xff] 0.0
    %27 = vst [vmem:[#allocation2 + $0x48] sm:$0xff] 0.0
    %28 = vst [vmem:[#allocation2 + $0x50] sm:$0xff] 0.0
    %29 = vst [vmem:[#allocation2 + $0x58] sm:$0xff] 0.0
    %30 = vst [vmem:[#allocation2 + $0x60] sm:$0xff] 0.0
    %31 = vst [vmem:[#allocation2 + $0x68] sm:$0xff] 0.0
    %32 = vst [vmem:[#allocation2 + $0x70] sm:$0xff] 0.0
    %33 = vst [vmem:[#allocation2 + $0x78] sm:$0xff] 0.0
  $region17: #{preact_basic_block.13} parent=0 // pred_fallthru
    _
  %v34 = vld [vmem:[#allocation2] sm:$0xff]
  %v35 = vld [vmem:[#allocation2 + $0x8] sm:$0xff]
  %v36 = vld [vmem:[#allocation2 + $0x10] sm:$0xff]
  %v37 = vld [vmem:[#allocation2 + $0x18] sm:$0xff]
  %v38 = vld [vmem:[#allocation2 + $0x20] sm:$0xff]
  %v39 = vld [vmem:[#allocation2 + $0x28] sm:$0xff]
  %v40 = vld [vmem:[#allocation2 + $0x30] sm:$0xff]
  %v41 = vld [vmem:[#allocation2 + $0x38] sm:$0xff]
  %v42 = vld [vmem:[#allocation2 + $0x40] sm:$0xff]
  %v43 = vld [vmem:[#allocation2 + $0x48] sm:$0xff]
  %v44 = vld [vmem:[#allocation2 + $0x50] sm:$0xff]
  %v45 = vld [vmem:[#allocation2 + $0x58] sm:$0xff]
  %v46 = vld [vmem:[#allocation2 + $0x60] sm:$0xff]
  %v47 = vld [vmem:[#allocation2 + $0x68] sm:$0xff]
  %v48 = vld [vmem:[#allocation2 + $0x70] sm:$0xff]
  %v49 = vld [vmem:[#allocation2 + $0x78] sm:$0xff]
  %v50 = vld [vmem:[%s0] sm:$0xff]
  %v51 = vld [vmem:[%s0 + $0x8] sm:$0xff]
  %v52 = vld [vmem:[%s0 + $0x10] sm:$0xff]
  %v53 = vld [vmem:[%s0 + $0x18] sm:$0xff]
  %v54 = vld [vmem:[%s0 + $0x20] sm:$0xff]
  %v55 = vld [vmem:[%s0 + $0x28] sm:$0xff]
  %v56 = vld [vmem:[%s0 + $0x30] sm:$0xff]
  %v57 = vld [vmem:[%s0 + $0x38] sm:$0xff]
  %v58 = vld [vmem:[%s0 + $0x40] sm:$0xff]
  %v59 = vld [vmem:[%s0 + $0x48] sm:$0xff]
  %v60 = vld [vmem:[%s0 + $0x50] sm:$0xff]
  %v61 = vld [vmem:[%s0 + $0x58] sm:$0xff]
  %v62 = vld [vmem:[%s0 + $0x60] sm:$0xff]
  %v63 = vld [vmem:[%s0 + $0x68] sm:$0xff]
  %v64 = vld [vmem:[%s0 + $0x70] sm:$0xff]
  %v65 = vld [vmem:[%s0 + $0x78] sm:$0xff]
  %v66 = vld [vmem:[%s1] sm:$0xff]
  %v67 = vld [vmem:[%s1 + $0x8] sm:$0xff]
  %v68 = vld [vmem:[%s1 + $0x10] sm:$0xff]
  %v69 = vld [vmem:[%s1 + $0x18] sm:$0xff]
  %v70 = vld [vmem:[%s1 + $0x20] sm:$0xff]
  %v71 = vld [vmem:[%s1 + $0x28] sm:$0xff]
  %v72 = vld [vmem:[%s1 + $0x30] sm:$0xff]
  %v73 = vld [vmem:[%s1 + $0x38] sm:$0xff]
  %v74 = vld [vmem:[%s1 + $0x40] sm:$0xff]
  %v75 = vld [vmem:[%s1 + $0x48] sm:$0xff]
  %v76 = vld [vmem:[%s1 + $0x50] sm:$0xff]
  %v77 = vld [vmem:[%s1 + $0x58] sm:$0xff]
  %v78 = vld [vmem:[%s1 + $0x60] sm:$0xff]
  %v79 = vld [vmem:[%s1 + $0x68] sm:$0xff]
  %v80 = vld [vmem:[%s1 + $0x70] sm:$0xff]
  %v81 = vld [vmem:[%s1 + $0x78] sm:$0xff]
  %82 = vmatprep.subr.mxu0 0.0
  %83 = vmatpush1.msra.mxu0 %v66
  %84 = vmatprep.subr.mxu0 0.0
  %85 = vmatpush1.msra.mxu0 %v67
  %86 = vmatprep.subr.mxu0 0.0
  %87 = vmatpush1.msra.mxu0 %v68
  %88 = vmatprep.subr.mxu0 0.0
  %89 = vmatpush1.msra.mxu0 %v69
  %90 = vmatprep.subr.mxu0 0.0
  %91 = vmatpush1.msra.mxu0 %v70
  %92 = vmatprep.subr.mxu0 0.0
  %93 = vmatpush1.msra.mxu0 %v71
  %94 = vmatprep.subr.mxu0 0.0
  %95 = vmatpush1.msra.mxu0 %v72
  %96 = vmatprep.subr.mxu0 0.0
  %97 = vmatpush1.msra.mxu0 %v73
  %98 = vmatprep.subr.mxu0 0.0
  %99 = vmatpush1.msra.mxu0 %v74
  %100 = vmatprep.subr.mxu0 0.0
  %101 = vmatpush1.msra.mxu0 %v75
  %102 = vmatprep.subr.mxu0 0.0
  %103 = vmatpush1.msra.mxu0 %v76
  %104 = vmatprep.subr.mxu0 0.0
  %105 = vmatpush1.msra.mxu0 %v77
  %106 = vmatprep.subr.mxu0 0.0
  %107 = vmatpush1.msra.mxu0 %v78
  %108 = vmatprep.subr.mxu0 0.0
  %109 = vmatpush1.msra.mxu0 %v79
  %110 = vmatprep.subr.mxu0 0.0
  %111 = vmatpush1.msra.mxu0 %v80
  %112 = vmatprep.subr.mxu0 0.0
  %113 = vmatpush1.msra.mxu0 %v81
  %114 = vmatprep.subr.mxu0 0.0
  %115 = vmatpush1.msra.mxu0 0.0
  %116 = vmatprep.subr.mxu0 0.0
  %117 = vmatpush1.msra.mxu0 0.0
  %118 = vmatprep.subr.mxu0 0.0
  %119 = vmatpush1.msra.mxu0 0.0
  %120 = vmatprep.subr.mxu0 0.0
  %121 = vmatpush1.msra.mxu0 0.0
  %122 = vmatprep.subr.mxu0 0.0
  %123 = vmatpush1.msra.mxu0 0.0
  %124 = vmatprep.subr.mxu0 0.0
  %125 = vmatpush1.msra.mxu0 0.0
  %126 = vmatprep.subr.mxu0 0.0
  %127 = vmatpush1.msra.mxu0 0.0
  %128 = vmatprep.subr.mxu0 0.0
  %129 = vmatpush1.msra.mxu0 0.0
  %130 = vmatprep.subr.mxu0 0.0
  %131 = vmatpush1.msra.mxu0 0.0
  %132 = vmatprep.subr.mxu0 0.0
  %133 = vmatpush1.msra.mxu0 0.0
  %134 = vmatprep.subr.mxu0 0.0
  %135 = vmatpush1.msra.mxu0 0.0
  %136 = vmatprep.subr.mxu0 0.0
  %137 = vmatpush1.msra.mxu0 0.0
  %138 = vmatprep.subr.mxu0 0.0
  %139 = vmatpush1.msra.mxu0 0.0
  %140 = vmatprep.subr.mxu0 0.0
  %141 = vmatpush1.msra.mxu0 0.0
  %142 = vmatprep.subr.mxu0 0.0
  %143 = vmatpush1.msra.mxu0 0.0
  %144 = vmatprep.subr.mxu0 0.0
  %145 = vmatpush1.msra.mxu0 0.0
  %146 = vmatprep.mubr.f32.mxu0 0.0
  %147 = vmatmul.mubr.f32.gmra.mrb[0].mxu0 %v50
  %v148 = vpop.f32.mrb[0].mxu0
  %v149 = vadd.f32 0.0, %v148
  %v150 = vpop.f32.mrb[0].mxu0
  %151 = vmatprep.mubr.f32.mxu0 0.0
  %152 = vmatmul.mubr.f32.gmra.mrb[0].mxu0 %v51
  %v153 = vpop.f32.mrb[0].mxu0
  %v154 = vadd.f32 0.0, %v153
  %v155 = vpop.f32.mrb[0].mxu0
  %156 = vmatprep.mubr.f32.mxu0 0.0
  %157 = vmatmul.mubr.f32.gmra.mrb[0].mxu0 %v52
  %v158 = vpop.f32.mrb[0].mxu0
  %v159 = vadd.f32 0.0, %v158
  %v160 = vpop.f32.mrb[0].mxu0
  %161 = vmatprep.mubr.f32.mxu0 0.0
  %162 = vmatmul.mubr.f32.gmra.mrb[0].mxu0 %v53
  %v163 = vpop.f32.mrb[0].mxu0
  %v164 = vadd.f32 0.0, %v163
  %v165 = vpop.f32.mrb[0].mxu0
  %166 = vmatprep.mubr.f32.mxu0 0.0
  %167 = vmatmul.mubr.f32.gmra.mrb[0].mxu0 %v54
  %v168 = vpop.f32.mrb[0].mxu0
  %v169 = vadd.f32 0.0, %v168
  %v170 = vpop.f32.mrb[0].mxu0
  %171 = vmatprep.mubr.f32.mxu0 0.0
  %172 = vmatmul.mubr.f32.gmra.mrb[0].mxu0 %v55
  %v173 = vpop.f32.mrb[0].mxu0
  %v174 = vadd.f32 0.0, %v173
  %v175 = vpop.f32.mrb[0].mxu0
  %176 = vmatprep.mubr.f32.mxu0 0.0
  %177 = vmatmul.mubr.f32.gmra.mrb[0].mxu0 %v56
  %v178 = vpop.f32.mrb[0].mxu0
  %v179 = vadd.f32 0.0, %v178
  %v180 = vpop.f32.mrb[0].mxu0
  %181 = vmatprep.mubr.f32.mxu0 0.0
  %182 = vmatmul.mubr.f32.gmra.mrb[0].mxu0 %v57
  %v183 = vpop.f32.mrb[0].mxu0
  %v184 = vadd.f32 0.0, %v183
  %v185 = vpop.f32.mrb[0].mxu0
  %186 = vmatprep.mubr.f32.mxu0 0.0
  %187 = vmatmul.mubr.f32.gmra.mrb[0].mxu0 %v58
  %v188 = vpop.f32.mrb[0].mxu0
  %v189 = vadd.f32 0.0, %v188
  %v190 = vpop.f32.mrb[0].mxu0
  %191 = vmatprep.mubr.f32.mxu0 0.0
  %192 = vmatmul.mubr.f32.gmra.mrb[0].mxu0 %v59
  %v193 = vpop.f32.mrb[0].mxu0
  %v194 = vadd.f32 0.0, %v193
  %v195 = vpop.f32.mrb[0].mxu0
  %196 = vmatprep.mubr.f32.mxu0 0.0
  %197 = vmatmul.mubr.f32.gmra.mrb[0].mxu0 %v60
  %v198 = vpop.f32.mrb[0].mxu0
  %v199 = vadd.f32 0.0, %v198
  %v200 = vpop.f32.mrb[0].mxu0
  %201 = vmatprep.mubr.f32.mxu0 0.0
  %202 = vmatmul.mubr.f32.gmra.mrb[0].mxu0 %v61
  %v203 = vpop.f32.mrb[0].mxu0
  %v204 = vadd.f32 0.0, %v203
  %v205 = vpop.f32.mrb[0].mxu0
  %206 = vmatprep.mubr.f32.mxu0 0.0
  %207 = vmatmul.mubr.f32.gmra.mrb[0].mxu0 %v62
  %v208 = vpop.f32.mrb[0].mxu0
  %v209 = vadd.f32 0.0, %v208
  %v210 = vpop.f32.mrb[0].mxu0
  %211 = vmatprep.mubr.f32.mxu0 0.0
  %212 = vmatmul.mubr.f32.gmra.mrb[0].mxu0 %v63
  %v213 = vpop.f32.mrb[0].mxu0
  %v214 = vadd.f32 0.0, %v213
  %v215 = vpop.f32.mrb[0].mxu0
  %216 = vmatprep.mubr.f32.mxu0 0.0
  %217 = vmatmul.mubr.f32.gmra.mrb[0].mxu0 %v64
  %v218 = vpop.f32.mrb[0].mxu0
  %v219 = vadd.f32 0.0, %v218
  %v220 = vpop.f32.mrb[0].mxu0
  %221 = vmatprep.mubr.f32.mxu0 0.0
  %222 = vmatmul.mubr.f32.gmra.mrb[0].mxu0 %v65
  %v223 = vpop.f32.mrb[0].mxu0
  %v224 = vadd.f32 0.0, %v223
  %v225 = vpop.f32.mrb[0].mxu0
  %226 = vdwg.mxu0
  %v227 = vadd.f32 %v34, %v149
  %v228 = vadd.f32 %v35, %v154
  %v229 = vadd.f32 %v36, %v159
  %v230 = vadd.f32 %v37, %v164
  %v231 = vadd.f32 %v38, %v169
  %v232 = vadd.f32 %v39, %v174
  %v233 = vadd.f32 %v40, %v179
  %v234 = vadd.f32 %v41, %v184
  %v235 = vadd.f32 %v42, %v189
  %v236 = vadd.f32 %v43, %v194
  %v237 = vadd.f32 %v44, %v199
  %v238 = vadd.f32 %v45, %v204
  %v239 = vadd.f32 %v46, %v209
  %v240 = vadd.f32 %v47, %v214
  %v241 = vadd.f32 %v48, %v219
  %v242 = vadd.f32 %v49, %v224
  %243 = vst [vmem:[#allocation2] sm:$0xff] %v227
  %244 = vst [vmem:[#allocation2 + $0x8] sm:$0xff] %v228
  %245 = vst [vmem:[#allocation2 + $0x10] sm:$0xff] %v229
  %246 = vst [vmem:[#allocation2 + $0x18] sm:$0xff] %v230
  %247 = vst [vmem:[#allocation2 + $0x20] sm:$0xff] %v231
  %248 = vst [vmem:[#allocation2 + $0x28] sm:$0xff] %v232
  %249 = vst [vmem:[#allocation2 + $0x30] sm:$0xff] %v233
  %250 = vst [vmem:[#allocation2 + $0x38] sm:$0xff] %v234
  %251 = vst [vmem:[#allocation2 + $0x40] sm:$0xff] %v235
  %252 = vst [vmem:[#allocation2 + $0x48] sm:$0xff] %v236
  %253 = vst [vmem:[#allocation2 + $0x50] sm:$0xff] %v237
  %254 = vst [vmem:[#allocation2 + $0x58] sm:$0xff] %v238
  %255 = vst [vmem:[#allocation2 + $0x60] sm:$0xff] %v239
  %256 = vst [vmem:[#allocation2 + $0x68] sm:$0xff] %v240
  %257 = vst [vmem:[#allocation2 + $0x70] sm:$0xff] %v241
  %258 = vst [vmem:[#allocation2 + $0x78] sm:$0xff] %v242
  // Predicated region
  $region18: #{preact_basic_block.13} parent=0 // pred_check
    %p259 = pneg %p14
  $region19: #{preact_basic_block.13} parent=0 // pred_check_branch
    %261 = sbr.rel (%p259) target = $region21
  $region20: #{preact_basic_block.13} parent=0 // pred_region
    %v262 = vld [vmem:[#allocation2] sm:$0xff]
    %v263 = vld [vmem:[#allocation2 + $0x8] sm:$0xff]
    %v264 = vld [vmem:[#allocation2 + $0x10] sm:$0xff]
    %v265 = vld [vmem:[#allocation2 + $0x18] sm:$0xff]
    %v266 = vld [vmem:[#allocation2 + $0x20] sm:$0xff]
    %v267 = vld [vmem:[#allocation2 + $0x28] sm:$0xff]
    %v268 = vld [vmem:[#allocation2 + $0x30] sm:$0xff]
    %v269 = vld [vmem:[#allocation2 + $0x38] sm:$0xff]
    %v270 = vld [vmem:[#allocation2 + $0x40] sm:$0xff]
    %v271 = vld [vmem:[#allocation2 + $0x48] sm:$0xff]
    %v272 = vld [vmem:[#allocation2 + $0x50] sm:$0xff]
    %v273 = vld [vmem:[#allocation2 + $0x58] sm:$0xff]
    %v274 = vld [vmem:[#allocation2 + $0x60] sm:$0xff]
    %v275 = vld [vmem:[#allocation2 + $0x68] sm:$0xff]
    %v276 = vld [vmem:[#allocation2 + $0x70] sm:$0xff]
    %v277 = vld [vmem:[#allocation2 + $0x78] sm:$0xff]
    %v278 = vld [vmem:[%s2] sm:$0xff]
    %v279 = vld [vmem:[%s2 + $0x8] sm:$0xff]
    %v280 = vld [vmem:[%s2 + $0x10] sm:$0xff]
    %v281 = vld [vmem:[%s2 + $0x18] sm:$0xff]
    %v282 = vld [vmem:[%s2 + $0x20] sm:$0xff]
    %v283 = vld [vmem:[%s2 + $0x28] sm:$0xff]
    %v284 = vld [vmem:[%s2 + $0x30] sm:$0xff]
    %v285 = vld [vmem:[%s2 + $0x38] sm:$0xff]
    %v286 = vld [vmem:[%s2 + $0x40] sm:$0xff]
    %v287 = vld [vmem:[%s2 + $0x48] sm:$0xff]
    %v288 = vld [vmem:[%s2 + $0x50] sm:$0xff]
    %v289 = vld [vmem:[%s2 + $0x58] sm:$0xff]
    %v290 = vld [vmem:[%s2 + $0x60] sm:$0xff]
    %v291 = vld [vmem:[%s2 + $0x68] sm:$0xff]
    %v292 = vld [vmem:[%s2 + $0x70] sm:$0xff]
    %v293 = vld [vmem:[%s2 + $0x78] sm:$0xff]
    %v294 = vadd.f32 %v262, %v278
    %v295 = vadd.f32 %v263, %v279
    %v296 = vadd.f32 %v264, %v280
    %v297 = vadd.f32 %v265, %v281
    %v298 = vadd.f32 %v266, %v282
    %v299 = vadd.f32 %v267, %v283
    %v300 = vadd.f32 %v268, %v284
    %v301 = vadd.f32 %v269, %v285
    %v302 = vadd.f32 %v270, %v286
    %v303 = vadd.f32 %v271, %v287
    %v304 = vadd.f32 %v272, %v288
    %v305 = vadd.f32 %v273, %v289
    %v306 = vadd.f32 %v274, %v290
    %v307 = vadd.f32 %v275, %v291
    %v308 = vadd.f32 %v276, %v292
    %v309 = vadd.f32 %v277, %v293
    %310 = vst [vmem:[%s3] sm:$0xff] %v294
    %311 = vst [vmem:[%s3 + $0x8] sm:$0xff] %v295
    %312 = vst [vmem:[%s3 + $0x10] sm:$0xff] %v296
    %313 = vst [vmem:[%s3 + $0x18] sm:$0xff] %v297
    %314 = vst [vmem:[%s3 + $0x20] sm:$0xff] %v298
    %315 = vst [vmem:[%s3 + $0x28] sm:$0xff] %v299
    %316 = vst [vmem:[%s3 + $0x30] sm:$0xff] %v300
    %317 = vst [vmem:[%s3 + $0x38] sm:$0xff] %v301
    %318 = vst [vmem:[%s3 + $0x40] sm:$0xff] %v302
    %319 = vst [vmem:[%s3 + $0x48] sm:$0xff] %v303
    %320 = vst [vmem:[%s3 + $0x50] sm:$0xff] %v304
    %321 = vst [vmem:[%s3 + $0x58] sm:$0xff] %v305
    %322 = vst [vmem:[%s3 + $0x60] sm:$0xff] %v306
    %323 = vst [vmem:[%s3 + $0x68] sm:$0xff] %v307
    %324 = vst [vmem:[%s3 + $0x70] sm:$0xff] %v308
    %325 = vst [vmem:[%s3 + $0x78] sm:$0xff] %v309
  $region21: #{preact_basic_block.13} parent=0 // pred_fallthru
    _
  // Predicated region
  $region22: #{preact_basic_block.13} parent=0 // pred_check
    _
  $region23: #{preact_basic_block.13} parent=0 // pred_check_branch
    %327 = sbr.rel (0) target = $region25
  $region24: #{preact_basic_block.13} parent=0 // pred_region
    _
  $region25: #{preact_basic_block.13} parent=0 // pred_fallthru
    _
  // Predicated region
  $region26: #{preact_basic_block.13} parent=0 // pred_check
    _
  $region27: #{preact_basic_block.13} parent=0 // pred_check_branch
    %329 = sbr.rel (0) target = $region29
  $region28: #{preact_basic_block.13} parent=0 // pred_region
    _
  $region29: #{preact_basic_block.13} parent=0 // pred_fallthru
    _

</llo_original>
